<compile_context>
chip_gen: v7x
topology: tpu7x:2x2x1
jax: 0.10.0
libtpu: 0.0.40
codegen_flags: <defaults>
</compile_context>

<pallas_src>
import math
import jax
import jax.numpy as jnp
from jax import lax
from jax.experimental import pallas as pl
from jax.experimental.pallas import tpu as pltpu

OBS_SIZE = 16
ACT_SIZE = 8
H1 = 400
H2 = 300
H1P = 512    # 400 padded to a 128-lane multiple
H2P = 384    # 300 padded to a 128-lane multiple
LANE = 128


def _round_up(x, m):
    return ((x + m - 1) // m) * m


def _critic_kernel(x_ref, a_ref, w1o_ref, w1a_ref, b1_ref, w2_ref, b2_ref,
                   w3_ref, b3_ref, out_ref):
    mm_dtype = w1o_ref.dtype

    # Layer 1 (fused concat): relu(x @ W1_obs + a @ W1_act + b1).
    # Inputs are cast to the stored weight dtype here (bf16 by default), so
    # the wrapper never touches HBM for casts.
    h1 = jnp.dot(x_ref[...].astype(mm_dtype), w1o_ref[...],
                 preferred_element_type=jnp.float32)
    h1 = h1 + jnp.dot(a_ref[...].astype(mm_dtype), w1a_ref[...],
                      preferred_element_type=jnp.float32)
    h1 = jnp.maximum(h1 + b1_ref[...], 0.0)

    # Layer 2: relu(h1 @ W2 + b2), f32 accumulation.
    h2 = jnp.dot(h1.astype(w2_ref.dtype), w2_ref[...],
                 preferred_element_type=jnp.float32)
    h2 = jnp.maximum(h2 + b2_ref[...], 0.0)

    # Layer 3 (N=1), produced directly in lane-dense row layout:
    #   q[0, r] = sum_k w3[0, k] * h2[r, k]
    # (tiny trans-B matmul, kept in f32 for final-layer precision).
    q = lax.dot_general(w3_ref[...], h2,
                        dimension_numbers=(((1,), (1,)), ((), ())),
                        preferred_element_type=jnp.float32)
    out_ref[0] = q + b3_ref[0, 0]


def ddpg_critic_forward(x, a, params, *, block_rows=1024):
    """x: (B, obs_size), a: (B, act_size) -> (B, 1) Q-values."""
    w1o, w1a, b1, w2, b2, w3, b3 = params

    B = x.shape[0]
    obs = x.shape[1]
    act = a.shape[1]
    h1p = w1o.shape[1]
    h2p = w2.shape[1]

    x = x.astype(jnp.float32)
    a = a.astype(jnp.float32)

    # Batch tile: multiple of 128 (lane-dense output row).  Aim for >= 4 grid
    # steps so the "parallel" batch axis shards across both v7x TensorCores;
    # cap at block_rows so huge batches keep big tiles (amortizes the ~0.35us
    # per-grid-step overhead and coarsens DMAs on v5e/v6e).
    tm = max(LANE, min(_round_up(block_rows, LANE),
                       _round_up(pl.cdiv(B, 4), LANE)))
    Bp = _round_up(B, tm)
    if Bp != B:
        # Only copies when B is not tile-aligned (typical training batches
        # are powers of two, so this is a no-op for them).
        x = jnp.pad(x, ((0, Bp - B), (0, 0)))
        a = jnp.pad(a, ((0, Bp - B), (0, 0)))
    grid_b = Bp // tm

    out = pl.pallas_call(
        _critic_kernel,
        out_shape=jax.ShapeDtypeStruct((grid_b, 1, tm), jnp.float32),
        grid=(grid_b,),
        in_specs=[
            # per-batch-tile activations (kept f32 in HBM; cast in-kernel)
            pl.BlockSpec((tm, obs), lambda i: (i, 0)),
            pl.BlockSpec((tm, act), lambda i: (i, 0)),
            # weights: constant block index -> DMA'd once, VMEM-resident
            pl.BlockSpec((obs, h1p), lambda i: (0, 0)),
            pl.BlockSpec((act, h1p), lambda i: (0, 0)),
            pl.BlockSpec((1, h1p), lambda i: (0, 0)),
            pl.BlockSpec((h1p, h2p), lambda i: (0, 0)),
            pl.BlockSpec((1, h2p), lambda i: (0, 0)),
            pl.BlockSpec((1, h2p), lambda i: (0, 0)),
            # final bias as an SMEM scalar
            pl.BlockSpec(memory_space=pltpu.MemorySpace.SMEM),
        ],
        # one lane-dense (1, tm) row of Q values per grid step -> unmasked vst
        out_specs=pl.BlockSpec((1, 1, tm), lambda i: (i, 0, 0)),
        compiler_params=pltpu.CompilerParams(
            dimension_semantics=("parallel",),
            vmem_limit_bytes=32 * 1024 * 1024),
    )(x, a, w1o, w1a, b1, w2, b2, w3, b3)

    return out.reshape(grid_b * tm)[:B].reshape(B, 1)


def init_params(key, obs_size=OBS_SIZE, act_size=ACT_SIZE,
                mm_dtype=jnp.bfloat16):
    """Matches torch.nn.Linear default init + uniform_(-0.003, 0.003) on the
    final layer's weight.  The big matmul weights are stored once in mm_dtype
    (bf16 by default: native MXU dtype, half the weight DMA); biases and the
    tiny final-layer weight stay f32.  Returns (padded kernel params, raw
    params for the pure-JAX reference)."""
    in1 = obs_size + act_size
    k = jax.random.split(key, 6)

    def unif(k_, shape, bound):
        return jax.random.uniform(k_, shape, jnp.float32, -bound, bound)

    bnd1 = 1.0 / math.sqrt(in1)
    bnd2 = 1.0 / math.sqrt(H1)
    bnd3 = 1.0 / math.sqrt(H2)

    # (in, out) layout so the kernel computes x @ W + b.
    w1 = unif(k[0], (in1, H1), bnd1)
    b1 = unif(k[1], (1, H1), bnd1)
    w2 = unif(k[2], (H1, H2), bnd2)
    b2 = unif(k[3], (1, H2), bnd2)
    w3 = unif(k[4], (1, H2), 0.003)   # final weight override uniform(-3e-3, 3e-3)
    b3 = unif(k[5], (1, 1), bnd3)     # final bias keeps nn.Linear default init

    # Split layer-1 weight for the fused concat and zero-pad hidden dims to
    # lane multiples.  Pads must stay exactly zero so ReLU(0)=0 keeps them
    # inert.  MXU weights are cast to mm_dtype here, once, not per call.
    w1o = (jnp.zeros((obs_size, H1P), jnp.float32)
           .at[:, :H1].set(w1[:obs_size]).astype(mm_dtype))
    w1a = (jnp.zeros((act_size, H1P), jnp.float32)
           .at[:, :H1].set(w1[obs_size:]).astype(mm_dtype))
    b1p = jnp.zeros((1, H1P), jnp.float32).at[:, :H1].set(b1)
    w2p = (jnp.zeros((H1P, H2P), jnp.float32)
           .at[:H1, :H2].set(w2).astype(mm_dtype))
    b2p = jnp.zeros((1, H2P), jnp.float32).at[:, :H2].set(b2)
    w3p = jnp.zeros((1, H2P), jnp.float32).at[:, :H2].set(w3)

    padded = (w1o, w1a, b1p, w2p, b2p, w3p, b3)
    raw = (w1, b1, w2, b2, w3, b3)
    return padded, raw


def _reference(x, a, raw):
    w1, b1, w2, b2, w3, b3 = raw
    xa = jnp.concatenate([x, a], axis=-1)
    h1 = jnp.maximum(xa @ w1 + b1, 0.0)
    h2 = jnp.maximum(h1 @ w2 + b2, 0.0)
    return h2 @ w3.T + b3


if __name__ == "__main__":
    key = jax.random.PRNGKey(0)
    kp, kx, ka = jax.random.split(key, 3)

    B = 2
    x = jax.random.normal(kx, (B, OBS_SIZE), jnp.float32)
    a = jax.random.normal(ka, (B, ACT_SIZE), jnp.float32)

    # Same raw weights in both precisions (same key).
    padded_bf16, raw = init_params(kp, mm_dtype=jnp.bfloat16)
    padded_f32, _ = init_params(kp, mm_dtype=jnp.float32)

    ref = _reference(x, a, raw)

    # f32 path (matches the PyTorch math up to MXU f32-emulation rounding).
    out_f32 = jax.block_until_ready(ddpg_critic_forward(x, a, padded_f32))
    assert out_f32.shape == (B, 1), out_f32.shape
    assert jnp.allclose(out_f32, ref, atol=1e-4, rtol=1e-4), (out_f32, ref)

    # bf16 default path (native MXU dtype on v5e/v6e/v7x, f32 accumulation).
    out_bf16 = jax.block_until_ready(ddpg_critic_forward(x, a, padded_bf16))
    assert out_bf16.shape == (B, 1), out_bf16.shape
    assert jnp.allclose(out_bf16, ref, atol=5e-2, rtol=5e-2), (out_bf16, ref)

    print("KERNEL_OK")
</pallas_src>

<mosaic_0001>
module attributes {stable_mosaic.version = 11 : i64} {
  func.func @_critic_kernel(%arg0: i32, %arg1: memref<128x16xf32, #tpu.memory_space<vmem>>, %arg2: memref<128x8xf32, #tpu.memory_space<vmem>>, %arg3: memref<16x512xf32, #tpu.memory_space<vmem>>, %arg4: memref<8x512xf32, #tpu.memory_space<vmem>>, %arg5: memref<1x512xf32, #tpu.memory_space<vmem>>, %arg6: memref<512x384xf32, #tpu.memory_space<vmem>>, %arg7: memref<1x384xf32, #tpu.memory_space<vmem>>, %arg8: memref<1x384xf32, #tpu.memory_space<vmem>>, %arg9: memref<1x1xf32, #tpu.memory_space<smem>>, %arg10: memref<1x1x128xf32, #tpu.memory_space<vmem>>) attributes {dimension_semantics = [#tpu.dimension_semantics<parallel>], iteration_bounds = array<i64: 1>, scalar_prefetch = 0 : i64, scratch_operands = 0 : i64, tpu.core_type = #tpu.core_type<tc>, window_params = [{transform_indices = @transform_0, window_bounds = array<i64: 128, 16>}, {transform_indices = @transform_1, window_bounds = array<i64: 128, 8>}, {pipeline_mode = #tpu.pipeline_mode<synchronous>, transform_indices = @transform_2, window_bounds = array<i64: 16, 512>}, {pipeline_mode = #tpu.pipeline_mode<synchronous>, transform_indices = @transform_3, window_bounds = array<i64: 8, 512>}, {pipeline_mode = #tpu.pipeline_mode<synchronous>, transform_indices = @transform_4, window_bounds = array<i64: 1, 512>}, {pipeline_mode = #tpu.pipeline_mode<synchronous>, transform_indices = @transform_5, window_bounds = array<i64: 512, 384>}, {pipeline_mode = #tpu.pipeline_mode<synchronous>, transform_indices = @transform_6, window_bounds = array<i64: 1, 384>}, {pipeline_mode = #tpu.pipeline_mode<synchronous>, transform_indices = @transform_7, window_bounds = array<i64: 1, 384>}, {transform_indices = @transform_8, window_bounds = array<i64: 1, 1>}, {transform_indices = @transform_9, window_bounds = array<i64: 1, 1, 128>}]} {
    %c0 = arith.constant 0 : index
    %c0_0 = arith.constant 0 : index
    %0 = vector.load %arg1[%c0, %c0_0] : memref<128x16xf32, #tpu.memory_space<vmem>>, vector<128x16xf32>
    %c0_1 = arith.constant 0 : index
    %c0_2 = arith.constant 0 : index
    %1 = vector.load %arg3[%c0_1, %c0_2] : memref<16x512xf32, #tpu.memory_space<vmem>>, vector<16x512xf32>
    %cst = arith.constant dense<0.000000e+00> : vector<128x512xf32>
    %2 = tpu.matmul %0, %1, %cst {dimension_numbers = #tpu.dot_dimension_numbers<[1], [0], [0], [1], [0, 0, 1, 1], [], []>} : vector<128x16xf32>, vector<16x512xf32>, vector<128x512xf32> -> vector<128x512xf32>
    %c0_3 = arith.constant 0 : index
    %c0_4 = arith.constant 0 : index
    %3 = vector.load %arg2[%c0_3, %c0_4] : memref<128x8xf32, #tpu.memory_space<vmem>>, vector<128x8xf32>
    %c0_5 = arith.constant 0 : index
    %c0_6 = arith.constant 0 : index
    %4 = vector.load %arg4[%c0_5, %c0_6] : memref<8x512xf32, #tpu.memory_space<vmem>>, vector<8x512xf32>
    %cst_7 = arith.constant dense<0.000000e+00> : vector<128x512xf32>
    %5 = tpu.matmul %3, %4, %cst_7 {dimension_numbers = #tpu.dot_dimension_numbers<[1], [0], [0], [1], [0, 0, 1, 1], [], []>} : vector<128x8xf32>, vector<8x512xf32>, vector<128x512xf32> -> vector<128x512xf32>
    %6 = arith.addf %2, %5 : vector<128x512xf32>
    %c0_8 = arith.constant 0 : index
    %c0_9 = arith.constant 0 : index
    %7 = vector.load %arg5[%c0_8, %c0_9] : memref<1x512xf32, #tpu.memory_space<vmem>>, vector<1x512xf32>
    %8 = vector.broadcast %7 : vector<1x512xf32> to vector<128x512xf32>
    %9 = arith.addf %6, %8 : vector<128x512xf32>
    %cst_10 = arith.constant 0.000000e+00 : f32
    %10 = vector.broadcast %cst_10 : f32 to vector<128x512xf32>
    %11 = arith.maximumf %9, %10 : vector<128x512xf32>
    %c0_11 = arith.constant 0 : index
    %c0_12 = arith.constant 0 : index
    %12 = vector.load %arg6[%c0_11, %c0_12] : memref<512x384xf32, #tpu.memory_space<vmem>>, vector<512x384xf32>
    %cst_13 = arith.constant dense<0.000000e+00> : vector<128x384xf32>
    %13 = tpu.matmul %11, %12, %cst_13 {dimension_numbers = #tpu.dot_dimension_numbers<[1], [0], [0], [1], [0, 0, 1, 1], [], []>} : vector<128x512xf32>, vector<512x384xf32>, vector<128x384xf32> -> vector<128x384xf32>
    %c0_14 = arith.constant 0 : index
    %c0_15 = arith.constant 0 : index
    %14 = vector.load %arg7[%c0_14, %c0_15] : memref<1x384xf32, #tpu.memory_space<vmem>>, vector<1x384xf32>
    %15 = vector.broadcast %14 : vector<1x384xf32> to vector<128x384xf32>
    %16 = arith.addf %13, %15 : vector<128x384xf32>
    %cst_16 = arith.constant 0.000000e+00 : f32
    %17 = vector.broadcast %cst_16 : f32 to vector<128x384xf32>
    %18 = arith.maximumf %16, %17 : vector<128x384xf32>
    %c0_17 = arith.constant 0 : index
    %c0_18 = arith.constant 0 : index
    %19 = vector.load %arg8[%c0_17, %c0_18] : memref<1x384xf32, #tpu.memory_space<vmem>>, vector<1x384xf32>
    %cst_19 = arith.constant dense<0.000000e+00> : vector<1x128xf32>
    %20 = tpu.matmul %19, %18, %cst_19 {dimension_numbers = #tpu.dot_dimension_numbers<[1], [1], [0], [0], [0, 0, 1, 0], [], []>} : vector<1x384xf32>, vector<128x384xf32>, vector<1x128xf32> -> vector<1x128xf32>
    %c0_20 = arith.constant 0 : index
    %c0_21 = arith.constant 0 : index
    %21 = memref.load %arg9[%c0_20, %c0_21] : memref<1x1xf32, #tpu.memory_space<smem>>
    %22 = vector.broadcast %21 : f32 to vector<1x128xf32>
    %23 = arith.addf %20, %22 : vector<1x128xf32>
    %c0_22 = arith.constant 0 : index
    %c0_23 = arith.constant 0 : index
    %c0_24 = arith.constant 0 : index
    %24 = vector.load %arg10[%c0_22, %c0_23, %c0_24] : memref<1x1x128xf32, #tpu.memory_space<vmem>>, vector<1x1x128xf32>
    %25 = vector.shape_cast %24 : vector<1x1x128xf32> to vector<1x128xf32>
    %26 = vector.shape_cast %23 : vector<1x128xf32> to vector<1x1x128xf32>
    tpu.vector_store %arg10[%c0_22, %c0_23, %c0_24], %26 {strides = array<i32>} : memref<1x1x128xf32, #tpu.memory_space<vmem>>, vector<1x1x128xf32>,
    return
  }
  func.func @transform_0(%arg0: i32) -> (i32, i32) {
    %c0_i32 = arith.constant 0 : i32
    %c0_i32_0 = arith.constant 0 : i32
    return %arg0, %c0_i32 : i32, i32
  }
  func.func @transform_1(%arg0: i32) -> (i32, i32) {
    %c0_i32 = arith.constant 0 : i32
    %c0_i32_0 = arith.constant 0 : i32
    return %arg0, %c0_i32 : i32, i32
  }
  func.func @transform_2(%arg0: i32) -> (i32, i32) {
    %c0_i32 = arith.constant 0 : i32
    %c0_i32_0 = arith.constant 0 : i32
    %c0_i32_1 = arith.constant 0 : i32
    return %c0_i32, %c0_i32_0 : i32, i32
  }
  func.func @transform_3(%arg0: i32) -> (i32, i32) {
    %c0_i32 = arith.constant 0 : i32
    %c0_i32_0 = arith.constant 0 : i32
    %c0_i32_1 = arith.constant 0 : i32
    return %c0_i32, %c0_i32_0 : i32, i32
  }
  func.func @transform_4(%arg0: i32) -> (i32, i32) {
    %c0_i32 = arith.constant 0 : i32
    %c0_i32_0 = arith.constant 0 : i32
    %c0_i32_1 = arith.constant 0 : i32
    return %c0_i32, %c0_i32_0 : i32, i32
  }
  func.func @transform_5(%arg0: i32) -> (i32, i32) {
    %c0_i32 = arith.constant 0 : i32
    %c0_i32_0 = arith.constant 0 : i32
    %c0_i32_1 = arith.constant 0 : i32
    return %c0_i32, %c0_i32_0 : i32, i32
  }
  func.func @transform_6(%arg0: i32) -> (i32, i32) {
    %c0_i32 = arith.constant 0 : i32
    %c0_i32_0 = arith.constant 0 : i32
    %c0_i32_1 = arith.constant 0 : i32
    return %c0_i32, %c0_i32_0 : i32, i32
  }
  func.func @transform_7(%arg0: i32) -> (i32, i32) {
    %c0_i32 = arith.constant 0 : i32
    %c0_i32_0 = arith.constant 0 : i32
    %c0_i32_1 = arith.constant 0 : i32
    return %c0_i32, %c0_i32_0 : i32, i32
  }
  func.func @transform_8(%arg0: i32) -> (i32, i32) {
    %c0_i32 = arith.constant 0 : i32
    %c0_i32_0 = arith.constant 0 : i32
    %c0_i32_1 = arith.constant 0 : i32
    return %c0_i32, %c0_i32_0 : i32, i32
  }
  func.func @transform_9(%arg0: i32) -> (i32, i32, i32) {
    %c0_i32 = arith.constant 0 : i32
    %c0_i32_0 = arith.constant 0 : i32
    %c0_i32_1 = arith.constant 0 : i32
    return %arg0, %c0_i32, %c0_i32_0 : i32, i32, i32
  }
}

</mosaic_0001>

<llo_original>
// kernel: tpu_custom_call.1
$region0: #{tpu_custom_call.1}
  #allocation0 [shape = 'u32[]', space=smem, size = 0x4, offset = 0x4, fixed_abs, tag = 'smem constant byte address 0x4 - core index']
  #allocation1 [shape = 'u32[144,128]{1,0:T(1,128)}', space=vmem, size = 0x12000, scoped, tag = 'internal scratch']
  #allocation2 [shape = 'f32[1,1]{1,0:T(1,128)S(6)}', space=smem, size = 0x200, scoped, tag = 'scoped memory for tpu_custom_call.1']
  %s0 = inlined_call_operand.vmem [shape: f32[128,16], index: 0, kind: input, shape index: {}]
  %s1 = inlined_call_operand.vmem [shape: f32[128,8], index: 1, kind: input, shape index: {}]
  %s2 = inlined_call_operand.vmem [shape: f32[16,512], index: 2, kind: input, shape index: {}]
  %s3 = inlined_call_operand.vmem [shape: f32[8,512], index: 3, kind: input, shape index: {}]
  %s4 = inlined_call_operand.vmem [shape: f32[1,512], index: 4, kind: input, shape index: {}]
  %s5 = inlined_call_operand.hbm [shape: f32[512,384], index: 5, kind: input, shape index: {}]
  %s6 = inlined_call_operand.vmem [shape: f32[1,384], index: 6, kind: input, shape index: {}]
  %s7 = inlined_call_operand.vmem [shape: f32[1,384], index: 7, kind: input, shape index: {}]
  %s8 = inlined_call_operand.<no memory space> [shape: f32[1,1], index: 8, kind: input, shape index: {}]
  %s9 = inlined_call_operand.hbm [shape: f32[1,1,128], index: 9, kind: output, shape index: {}]
  %s10 = sld [smem:[#allocation0]]
  $region50: #{tpu_custom_call.1} parent=0
    _
  %s12 = ssub.s32 1, %s10
  %s13 = scalar_select 0, %s12, %s10
  %14 = sst [smem:[#allocation2]] %s8
  $region1: #{tpu_custom_call.1} parent=0
    #allocation3 [shape = 'u8[786432]{0}', space=vmem, size = 0xc0000, scoped, tag = 'input window, operand 5, single buffered']
    #allocation4 [shape = 's32[1]{0}', space=sflag, size = 0x4, scoped, tag = 'scoped memory for tpu_custom_call.1']
    #allocation5 [shape = 's32[1]{0}', space=sflag, size = 0x4, scoped, tag = 'scoped memory for tpu_custom_call.1']
    #allocation6 [shape = 'u8[512]{0}', space=vmem, size = 0x400, scoped, tag = 'output window, operand 0, single buffered']
    %15 = vsyncpa [#allocation4], 0
    %16 = vsyncpa [#allocation5], 0
    // Predicated region
    $region2: #{tpu_custom_call.1} parent=1 // pred_check
      _
    $region3: #{tpu_custom_call.1} parent=1 // pred_check_branch
      %18 = sbr.rel (0) target = $region5
    $region4: #{tpu_custom_call.1} parent=1 // pred_region
      _
    $region5: #{tpu_custom_call.1} parent=1 // pred_fallthru
      _
    // Predicated region
    $region6: #{tpu_custom_call.1} parent=1 // pred_check
      _
    $region7: #{tpu_custom_call.1} parent=1 // pred_check_branch
      %20 = sbr.rel (0) target = $region9
    $region8: #{tpu_custom_call.1} parent=1 // pred_region
      _
    $region9: #{tpu_custom_call.1} parent=1 // pred_fallthru
      _
    // Predicated region
    $region10: #{tpu_custom_call.1} parent=1 // pred_check
      _
    $region11: #{tpu_custom_call.1} parent=1 // pred_check_branch
      %22 = sbr.rel (0) target = $region13
    $region12: #{tpu_custom_call.1} parent=1 // pred_region
      _
    $region13: #{tpu_custom_call.1} parent=1 // pred_fallthru
      _
    // Predicated region
    $region14: #{tpu_custom_call.1} parent=1 // pred_check
      _
    $region15: #{tpu_custom_call.1} parent=1 // pred_check_branch
      %24 = sbr.rel (0) target = $region17
    $region16: #{tpu_custom_call.1} parent=1 // pred_region
      _
    $region17: #{tpu_custom_call.1} parent=1 // pred_fallthru
      _
    // Predicated region
    $region18: #{tpu_custom_call.1} parent=1 // pred_check
      _
    $region19: #{tpu_custom_call.1} parent=1 // pred_check_branch
      %26 = sbr.rel (0) target = $region21
    $region20: #{tpu_custom_call.1} parent=1 // pred_region
      _
    $region21: #{tpu_custom_call.1} parent=1 // pred_fallthru
      _
    // Predicated region
    $region22: #{tpu_custom_call.1} parent=1 // pred_check
      _
    $region23: #{tpu_custom_call.1} parent=1 // pred_check_branch
      %28 = sbr.rel (0) target = $region25
    $region24: #{tpu_custom_call.1} parent=1 // pred_region
      %s30 = ssub.s32 24576, 24576
      %31 = vsyncadd [#allocation4], %s30
      %s32 = sshll.u32 [#allocation3], 4
      %s33 = int_to_ptr.vmem [resolvable:$true] %s32
      %38 = dma.hbm_to_vmem [thread:$0]  %s5, 24576, %s33, [#allocation4], 384, 384, 24
    $region25: #{tpu_custom_call.1} parent=1 // pred_fallthru
      _
    // Predicated region
    $region26: #{tpu_custom_call.1} parent=1 // pred_check
      _
    $region27: #{tpu_custom_call.1} parent=1 // pred_check_branch
      %40 = sbr.rel (0) target = $region29
    $region28: #{tpu_custom_call.1} parent=1 // pred_region
      _
    $region29: #{tpu_custom_call.1} parent=1 // pred_fallthru
      _
    // Predicated region
    $region30: #{tpu_custom_call.1} parent=1 // pred_check
      _
    $region31: #{tpu_custom_call.1} parent=1 // pred_check_branch
      %42 = sbr.rel (0) target = $region33
    $region32: #{tpu_custom_call.1} parent=1 // pred_region
      _
    $region33: #{tpu_custom_call.1} parent=1 // pred_fallthru
      _
    // Predicated region
    $region34: #{tpu_custom_call.1} parent=1 // pred_check
      _
    $region35: #{tpu_custom_call.1} parent=1 // pred_check_branch
      %44 = sbr.rel (0) target = $region37
    $region36: #{tpu_custom_call.1} parent=1 // pred_region
      _
    $region37: #{tpu_custom_call.1} parent=1 // pred_fallthru
      _
    // Predicated region
    $region38: #{tpu_custom_call.1} parent=1 // pred_check
      _
    $region39: #{tpu_custom_call.1} parent=1 // pred_check_branch
      %46 = sbr.rel (0) target = $region41
    $region40: #{tpu_custom_call.1} parent=1 // pred_region
      %47 = dma.done [#allocation4], 24576
    $region41: #{tpu_custom_call.1} parent=1 // pred_fallthru
      _
    %v48 = vld [vmem:[%s0] sm:$0xff]
    %v49 = vld [vmem:[%s0 + $0x8] sm:$0xff]
    %v50 = vld [vmem:[%s0 + $0x10] sm:$0xff]
    %v51 = vld [vmem:[%s0 + $0x18] sm:$0xff]
    %v52 = vld [vmem:[%s0 + $0x20] sm:$0xff]
    %v53 = vld [vmem:[%s0 + $0x28] sm:$0xff]
    %v54 = vld [vmem:[%s0 + $0x30] sm:$0xff]
    %v55 = vld [vmem:[%s0 + $0x38] sm:$0xff]
    %v56 = vld [vmem:[%s0 + $0x40] sm:$0xff]
    %v57 = vld [vmem:[%s0 + $0x48] sm:$0xff]
    %v58 = vld [vmem:[%s0 + $0x50] sm:$0xff]
    %v59 = vld [vmem:[%s0 + $0x58] sm:$0xff]
    %v60 = vld [vmem:[%s0 + $0x60] sm:$0xff]
    %v61 = vld [vmem:[%s0 + $0x68] sm:$0xff]
    %v62 = vld [vmem:[%s0 + $0x70] sm:$0xff]
    %v63 = vld [vmem:[%s0 + $0x78] sm:$0xff]
    %v64 = vld [vmem:[%s2] sm:$0xff]
    %v65 = vld [vmem:[%s2 + $0x8] sm:$0xff]
    %v66 = vld [vmem:[%s2 + $0x10] sm:$0xff]
    %v67 = vld [vmem:[%s2 + $0x18] sm:$0xff]
    %v68 = vld [vmem:[%s2 + $0x20] sm:$0xff]
    %v69 = vld [vmem:[%s2 + $0x28] sm:$0xff]
    %v70 = vld [vmem:[%s2 + $0x30] sm:$0xff]
    %v71 = vld [vmem:[%s2 + $0x38] sm:$0xff]
    %v72 = vld [vmem:[%s1] sm:$0xff]
    %v73 = vld [vmem:[%s1 + $0x8] sm:$0xff]
    %v74 = vld [vmem:[%s1 + $0x10] sm:$0xff]
    %v75 = vld [vmem:[%s1 + $0x18] sm:$0xff]
    %v76 = vld [vmem:[%s1 + $0x20] sm:$0xff]
    %v77 = vld [vmem:[%s1 + $0x28] sm:$0xff]
    %v78 = vld [vmem:[%s1 + $0x30] sm:$0xff]
    %v79 = vld [vmem:[%s1 + $0x38] sm:$0xff]
    %v80 = vld [vmem:[%s1 + $0x40] sm:$0xff]
    %v81 = vld [vmem:[%s1 + $0x48] sm:$0xff]
    %v82 = vld [vmem:[%s1 + $0x50] sm:$0xff]
    %v83 = vld [vmem:[%s1 + $0x58] sm:$0xff]
    %v84 = vld [vmem:[%s1 + $0x60] sm:$0xff]
    %v85 = vld [vmem:[%s1 + $0x68] sm:$0xff]
    %v86 = vld [vmem:[%s1 + $0x70] sm:$0xff]
    %v87 = vld [vmem:[%s1 + $0x78] sm:$0xff]
    %v88 = vld [vmem:[%s3] sm:$0xff]
    %v89 = vld [vmem:[%s3 + $0x8] sm:$0xff]
    %v90 = vld [vmem:[%s3 + $0x10] sm:$0xff]
    %v91 = vld [vmem:[%s3 + $0x18] sm:$0xff]
    %vm92 = vcmask 64512
    %v94 = vsel %vm92, %v72, 0
    %v97 = vsel %vm92, %v73, 0
    %v100 = vsel %vm92, %v74, 0
    %v103 = vsel %vm92, %v75, 0
    %v106 = vsel %vm92, %v76, 0
    %v109 = vsel %vm92, %v77, 0
    %v112 = vsel %vm92, %v78, 0
    %v115 = vsel %vm92, %v79, 0
    %v118 = vsel %vm92, %v80, 0
    %v121 = vsel %vm92, %v81, 0
    %v124 = vsel %vm92, %v82, 0
    %v127 = vsel %vm92, %v83, 0
    %v130 = vsel %vm92, %v84, 0
    %v133 = vsel %vm92, %v85, 0
    %v136 = vsel %vm92, %v86, 0
    %v139 = vsel %vm92, %v87, 0
    %141 = vmatprep.subr.mxu0 %v89
    %142 = vmatpush1.msra.mxu0 %v88
    %143 = vmatprep.subr.mxu0 0.0
    %144 = vmatpush1.msra.mxu0 0.0
    %145 = vmatprep.subr.mxu0 0.0
    %146 = vmatpush1.msra.mxu0 0.0
    %147 = vmatprep.subr.mxu0 0.0
    %148 = vmatpush1.msra.mxu0 0.0
    %149 = vmatprep.subr.mxu0 0.0
    %150 = vmatpush1.msra.mxu0 0.0
    %151 = vmatprep.subr.mxu0 0.0
    %152 = vmatpush1.msra.mxu0 0.0
    %153 = vmatprep.subr.mxu0 0.0
    %154 = vmatpush1.msra.mxu0 0.0
    %155 = vmatprep.subr.mxu0 0.0
    %156 = vmatpush1.msra.mxu0 0.0
    %157 = vmatprep.subr.mxu0 0.0
    %158 = vmatpush1.msra.mxu0 0.0
    %159 = vmatprep.subr.mxu0 0.0
    %160 = vmatpush1.msra.mxu0 0.0
    %161 = vmatprep.subr.mxu0 0.0
    %162 = vmatpush1.msra.mxu0 0.0
    %163 = vmatprep.subr.mxu0 0.0
    %164 = vmatpush1.msra.mxu0 0.0
    %165 = vmatprep.subr.mxu0 0.0
    %166 = vmatpush1.msra.mxu0 0.0
    %167 = vmatprep.subr.mxu0 0.0
    %168 = vmatpush1.msra.mxu0 0.0
    %169 = vmatprep.subr.mxu0 0.0
    %170 = vmatpush1.msra.mxu0 0.0
    %171 = vmatprep.subr.mxu0 0.0
    %172 = vmatpush1.msra.mxu0 0.0
    %173 = vmatprep.subr.mxu0 0.0
    %174 = vmatpush1.msra.mxu0 0.0
    %175 = vmatprep.subr.mxu0 0.0
    %176 = vmatpush1.msra.mxu0 0.0
    %177 = vmatprep.subr.mxu0 0.0
    %178 = vmatpush1.msra.mxu0 0.0
    %179 = vmatprep.subr.mxu0 0.0
    %180 = vmatpush1.msra.mxu0 0.0
    %181 = vmatprep.subr.mxu0 0.0
    %182 = vmatpush1.msra.mxu0 0.0
    %183 = vmatprep.subr.mxu0 0.0
    %184 = vmatpush1.msra.mxu0 0.0
    %185 = vmatprep.subr.mxu0 0.0
    %186 = vmatpush1.msra.mxu0 0.0
    %187 = vmatprep.subr.mxu0 0.0
    %188 = vmatpush1.msra.mxu0 0.0
    %189 = vmatprep.subr.mxu0 0.0
    %190 = vmatpush1.msra.mxu0 0.0
    %191 = vmatprep.subr.mxu0 0.0
    %192 = vmatpush1.msra.mxu0 0.0
    %193 = vmatprep.subr.mxu0 0.0
    %194 = vmatpush1.msra.mxu0 0.0
    %195 = vmatprep.subr.mxu0 0.0
    %196 = vmatpush1.msra.mxu0 0.0
    %197 = vmatprep.subr.mxu0 0.0
    %198 = vmatpush1.msra.mxu0 0.0
    %199 = vmatprep.subr.mxu0 0.0
    %200 = vmatpush1.msra.mxu0 0.0
    %201 = vmatprep.subr.mxu0 0.0
    %202 = vmatpush1.msra.mxu0 0.0
    %203 = vmatprep.subr.mxu0 0.0
    %204 = vmatpush1.msra.mxu0 0.0
    %205 = vmatprep.mubr.f32.mxu0 0.0
    %206 = vmatmul.mubr.f32.gmra.mrb[0].mxu0 %v94
    %v207 = vpop.f32.mrb[0].mxu0
    %v208 = vadd.f32 0.0, %v207
    %v209 = vpop.f32.mrb[0].mxu0
    %v210 = vadd.f32 0.0, %v209
    %211 = vmatprep.mubr.f32.mxu0 0.0
    %212 = vmatmul.mubr.f32.gmra.mrb[0].mxu0 %v97
    %v213 = vpop.f32.mrb[0].mxu0
    %v214 = vadd.f32 0.0, %v213
    %v215 = vpop.f32.mrb[0].mxu0
    %v216 = vadd.f32 0.0, %v215
    %217 = vmatprep.mubr.f32.mxu0 0.0
    %218 = vmatmul.mubr.f32.gmra.mrb[0].mxu0 %v100
    %v219 = vpop.f32.mrb[0].mxu0
    %v220 = vadd.f32 0.0, %v219
    %v221 = vpop.f32.mrb[0].mxu0
    %v222 = vadd.f32 0.0, %v221
    %223 = vmatprep.mubr.f32.mxu0 0.0
    %224 = vmatmul.mubr.f32.gmra.mrb[0].mxu0 %v103
    %v225 = vpop.f32.mrb[0].mxu0
    %v226 = vadd.f32 0.0, %v225
    %v227 = vpop.f32.mrb[0].mxu0
    %v228 = vadd.f32 0.0, %v227
    %229 = vmatprep.mubr.f32.mxu0 0.0
    %230 = vmatmul.mubr.f32.gmra.mrb[0].mxu0 %v106
    %v231 = vpop.f32.mrb[0].mxu0
    %v232 = vadd.f32 0.0, %v231
    %v233 = vpop.f32.mrb[0].mxu0
    %v234 = vadd.f32 0.0, %v233
    %235 = vmatprep.mubr.f32.mxu0 0.0
    %236 = vmatmul.mubr.f32.gmra.mrb[0].mxu0 %v109
    %v237 = vpop.f32.mrb[0].mxu0
    %v238 = vadd.f32 0.0, %v237
    %v239 = vpop.f32.mrb[0].mxu0
    %v240 = vadd.f32 0.0, %v239
    %241 = vmatprep.mubr.f32.mxu0 0.0
    %242 = vmatmul.mubr.f32.gmra.mrb[0].mxu0 %v112
    %v243 = vpop.f32.mrb[0].mxu0
    %v244 = vadd.f32 0.0, %v243
    %v245 = vpop.f32.mrb[0].mxu0
    %v246 = vadd.f32 0.0, %v245
    %247 = vmatprep.mubr.f32.mxu0 0.0
    %248 = vmatmul.mubr.f32.gmra.mrb[0].mxu0 %v115
    %v249 = vpop.f32.mrb[0].mxu0
    %v250 = vadd.f32 0.0, %v249
    %v251 = vpop.f32.mrb[0].mxu0
    %v252 = vadd.f32 0.0, %v251
    %253 = vmatprep.mubr.f32.mxu0 0.0
    %254 = vmatmul.mubr.f32.gmra.mrb[0].mxu0 %v118
    %v255 = vpop.f32.mrb[0].mxu0
    %v256 = vadd.f32 0.0, %v255
    %v257 = vpop.f32.mrb[0].mxu0
    %v258 = vadd.f32 0.0, %v257
    %259 = vmatprep.mubr.f32.mxu0 0.0
    %260 = vmatmul.mubr.f32.gmra.mrb[0].mxu0 %v121
    %v261 = vpop.f32.mrb[0].mxu0
    %v262 = vadd.f32 0.0, %v261
    %v263 = vpop.f32.mrb[0].mxu0
    %v264 = vadd.f32 0.0, %v263
    %265 = vmatprep.mubr.f32.mxu0 0.0
    %266 = vmatmul.mubr.f32.gmra.mrb[0].mxu0 %v124
    %v267 = vpop.f32.mrb[0].mxu0
    %v268 = vadd.f32 0.0, %v267
    %v269 = vpop.f32.mrb[0].mxu0
    %v270 = vadd.f32 0.0, %v269
    %271 = vmatprep.mubr.f32.mxu0 0.0
    %272 = vmatmul.mubr.f32.gmra.mrb[0].mxu0 %v127
    %v273 = vpop.f32.mrb[0].mxu0
    %v274 = vadd.f32 0.0, %v273
    %v275 = vpop.f32.mrb[0].mxu0
    %v276 = vadd.f32 0.0, %v275
    %277 = vmatprep.mubr.f32.mxu0 0.0
    %278 = vmatmul.mubr.f32.gmra.mrb[0].mxu0 %v130
    %v279 = vpop.f32.mrb[0].mxu0
    %v280 = vadd.f32 0.0, %v279
    %v281 = vpop.f32.mrb[0].mxu0
    %v282 = vadd.f32 0.0, %v281
    %283 = vmatprep.mubr.f32.mxu0 0.0
    %284 = vmatmul.mubr.f32.gmra.mrb[0].mxu0 %v133
    %v285 = vpop.f32.mrb[0].mxu0
    %v286 = vadd.f32 0.0, %v285
    %v287 = vpop.f32.mrb[0].mxu0
    %v288 = vadd.f32 0.0, %v287
    %289 = vmatprep.mubr.f32.mxu0 0.0
    %290 = vmatmul.mubr.f32.gmra.mrb[0].mxu0 %v136
    %v291 = vpop.f32.mrb[0].mxu0
    %v292 = vadd.f32 0.0, %v291
    %v293 = vpop.f32.mrb[0].mxu0
    %v294 = vadd.f32 0.0, %v293
    %295 = vmatprep.mubr.f32.mxu0 0.0
    %296 = vmatmul.mubr.f32.gmra.mrb[0].mxu0 %v139
    %v297 = vpop.f32.mrb[0].mxu0
    %v298 = vadd.f32 0.0, %v297
    %v299 = vpop.f32.mrb[0].mxu0
    %v300 = vadd.f32 0.0, %v299
    %301 = vdwg.mxu0
    %302 = vmatprep.subr.mxu0 %v91
    %303 = vmatpush1.msra.mxu0 %v90
    %304 = vmatprep.subr.mxu0 0.0
    %305 = vmatpush1.msra.mxu0 0.0
    %306 = vmatprep.subr.mxu0 0.0
    %307 = vmatpush1.msra.mxu0 0.0
    %308 = vmatprep.subr.mxu0 0.0
    %309 = vmatpush1.msra.mxu0 0.0
    %310 = vmatprep.subr.mxu0 0.0
    %311 = vmatpush1.msra.mxu0 0.0
    %312 = vmatprep.subr.mxu0 0.0
    %313 = vmatpush1.msra.mxu0 0.0
    %314 = vmatprep.subr.mxu0 0.0
    %315 = vmatpush1.msra.mxu0 0.0
    %316 = vmatprep.subr.mxu0 0.0
    %317 = vmatpush1.msra.mxu0 0.0
    %318 = vmatprep.subr.mxu0 0.0
    %319 = vmatpush1.msra.mxu0 0.0
    %320 = vmatprep.subr.mxu0 0.0
    %321 = vmatpush1.msra.mxu0 0.0
    %322 = vmatprep.subr.mxu0 0.0
    %323 = vmatpush1.msra.mxu0 0.0
    %324 = vmatprep.subr.mxu0 0.0
    %325 = vmatpush1.msra.mxu0 0.0
    %326 = vmatprep.subr.mxu0 0.0
    %327 = vmatpush1.msra.mxu0 0.0
    %328 = vmatprep.subr.mxu0 0.0
    %329 = vmatpush1.msra.mxu0 0.0
    %330 = vmatprep.subr.mxu0 0.0
    %331 = vmatpush1.msra.mxu0 0.0
    %332 = vmatprep.subr.mxu0 0.0
    %333 = vmatpush1.msra.mxu0 0.0
    %334 = vmatprep.subr.mxu0 0.0
    %335 = vmatpush1.msra.mxu0 0.0
    %336 = vmatprep.subr.mxu0 0.0
    %337 = vmatpush1.msra.mxu0 0.0
    %338 = vmatprep.subr.mxu0 0.0
    %339 = vmatpush1.msra.mxu0 0.0
    %340 = vmatprep.subr.mxu0 0.0
    %341 = vmatpush1.msra.mxu0 0.0
    %342 = vmatprep.subr.mxu0 0.0
    %343 = vmatpush1.msra.mxu0 0.0
    %344 = vmatprep.subr.mxu0 0.0
    %345 = vmatpush1.msra.mxu0 0.0
    %346 = vmatprep.subr.mxu0 0.0
    %347 = vmatpush1.msra.mxu0 0.0
    %348 = vmatprep.subr.mxu0 0.0
    %349 = vmatpush1.msra.mxu0 0.0
    %350 = vmatprep.subr.mxu0 0.0
    %351 = vmatpush1.msra.mxu0 0.0
    %352 = vmatprep.subr.mxu0 0.0
    %353 = vmatpush1.msra.mxu0 0.0
    %354 = vmatprep.subr.mxu0 0.0
    %355 = vmatpush1.msra.mxu0 0.0
    %356 = vmatprep.subr.mxu0 0.0
    %357 = vmatpush1.msra.mxu0 0.0
    %358 = vmatprep.subr.mxu0 0.0
    %359 = vmatpush1.msra.mxu0 0.0
    %360 = vmatprep.subr.mxu0 0.0
    %361 = vmatpush1.msra.mxu0 0.0
    %362 = vmatprep.subr.mxu0 0.0
    %363 = vmatpush1.msra.mxu0 0.0
    %364 = vmatprep.subr.mxu0 0.0
    %365 = vmatpush1.msra.mxu0 0.0
    %366 = vmatprep.mubr.f32.mxu0 0.0
    %367 = vmatmul.mubr.f32.gmra.mrb[0].mxu0 %v94
    %v368 = vpop.f32.mrb[0].mxu0
    %v369 = vadd.f32 0.0, %v368
    %v370 = vpop.f32.mrb[0].mxu0
    %v371 = vadd.f32 0.0, %v370
    %372 = vmatprep.mubr.f32.mxu0 0.0
    %373 = vmatmul.mubr.f32.gmra.mrb[0].mxu0 %v97
    %v374 = vpop.f32.mrb[0].mxu0
    %v375 = vadd.f32 0.0, %v374
    %v376 = vpop.f32.mrb[0].mxu0
    %v377 = vadd.f32 0.0, %v376
    %378 = vmatprep.mubr.f32.mxu0 0.0
    %379 = vmatmul.mubr.f32.gmra.mrb[0].mxu0 %v100
    %v380 = vpop.f32.mrb[0].mxu0
    %v381 = vadd.f32 0.0, %v380
    %v382 = vpop.f32.mrb[0].mxu0
    %v383 = vadd.f32 0.0, %v382
    %384 = vmatprep.mubr.f32.mxu0 0.0
    %385 = vmatmul.mubr.f32.gmra.mrb[0].mxu0 %v103
    %v386 = vpop.f32.mrb[0].mxu0
    %v387 = vadd.f32 0.0, %v386
    %v388 = vpop.f32.mrb[0].mxu0
    %v389 = vadd.f32 0.0, %v388
    %390 = vmatprep.mubr.f32.mxu0 0.0
    %391 = vmatmul.mubr.f32.gmra.mrb[0].mxu0 %v106
    %v392 = vpop.f32.mrb[0].mxu0
    %v393 = vadd.f32 0.0, %v392
    %v394 = vpop.f32.mrb[0].mxu0
    %v395 = vadd.f32 0.0, %v394
    %396 = vmatprep.mubr.f32.mxu0 0.0
    %397 = vmatmul.mubr.f32.gmra.mrb[0].mxu0 %v109
    %v398 = vpop.f32.mrb[0].mxu0
    %v399 = vadd.f32 0.0, %v398
    %v400 = vpop.f32.mrb[0].mxu0
    %v401 = vadd.f32 0.0, %v400
    %402 = vmatprep.mubr.f32.mxu0 0.0
    %403 = vmatmul.mubr.f32.gmra.mrb[0].mxu0 %v112
    %v404 = vpop.f32.mrb[0].mxu0
    %v405 = vadd.f32 0.0, %v404
    %v406 = vpop.f32.mrb[0].mxu0
    %v407 = vadd.f32 0.0, %v406
    %408 = vmatprep.mubr.f32.mxu0 0.0
    %409 = vmatmul.mubr.f32.gmra.mrb[0].mxu0 %v115
    %v410 = vpop.f32.mrb[0].mxu0
    %v411 = vadd.f32 0.0, %v410
    %v412 = vpop.f32.mrb[0].mxu0
    %v413 = vadd.f32 0.0, %v412
    %414 = vmatprep.mubr.f32.mxu0 0.0
    %415 = vmatmul.mubr.f32.gmra.mrb[0].mxu0 %v118
    %v416 = vpop.f32.mrb[0].mxu0
    %v417 = vadd.f32 0.0, %v416
    %v418 = vpop.f32.mrb[0].mxu0
    %v419 = vadd.f32 0.0, %v418
    %420 = vmatprep.mubr.f32.mxu0 0.0
    %421 = vmatmul.mubr.f32.gmra.mrb[0].mxu0 %v121
    %v422 = vpop.f32.mrb[0].mxu0
    %v423 = vadd.f32 0.0, %v422
    %v424 = vpop.f32.mrb[0].mxu0
    %v425 = vadd.f32 0.0, %v424
    %426 = vmatprep.mubr.f32.mxu0 0.0
    %427 = vmatmul.mubr.f32.gmra.mrb[0].mxu0 %v124
    %v428 = vpop.f32.mrb[0].mxu0
    %v429 = vadd.f32 0.0, %v428
    %v430 = vpop.f32.mrb[0].mxu0
    %v431 = vadd.f32 0.0, %v430
    %432 = vmatprep.mubr.f32.mxu0 0.0
    %433 = vmatmul.mubr.f32.gmra.mrb[0].mxu0 %v127
    %v434 = vpop.f32.mrb[0].mxu0
    %v435 = vadd.f32 0.0, %v434
    %v436 = vpop.f32.mrb[0].mxu0
    %v437 = vadd.f32 0.0, %v436
    %438 = vmatprep.mubr.f32.mxu0 0.0
    %439 = vmatmul.mubr.f32.gmra.mrb[0].mxu0 %v130
    %v440 = vpop.f32.mrb[0].mxu0
    %v441 = vadd.f32 0.0, %v440
    %v442 = vpop.f32.mrb[0].mxu0
    %v443 = vadd.f32 0.0, %v442
    %444 = vmatprep.mubr.f32.mxu0 0.0
    %445 = vmatmul.mubr.f32.gmra.mrb[0].mxu0 %v133
    %v446 = vpop.f32.mrb[0].mxu0
    %v447 = vadd.f32 0.0, %v446
    %v448 = vpop.f32.mrb[0].mxu0
    %v449 = vadd.f32 0.0, %v448
    %450 = vmatprep.mubr.f32.mxu0 0.0
    %451 = vmatmul.mubr.f32.gmra.mrb[0].mxu0 %v136
    %v452 = vpop.f32.mrb[0].mxu0
    %v453 = vadd.f32 0.0, %v452
    %v454 = vpop.f32.mrb[0].mxu0
    %v455 = vadd.f32 0.0, %v454
    %456 = vmatprep.mubr.f32.mxu0 0.0
    %457 = vmatmul.mubr.f32.gmra.mrb[0].mxu0 %v139
    %v458 = vpop.f32.mrb[0].mxu0
    %v459 = vadd.f32 0.0, %v458
    %v460 = vpop.f32.mrb[0].mxu0
    %v461 = vadd.f32 0.0, %v460
    %462 = vdwg.mxu0
    %vm463 = vcmask 130048
    %v465 = vsel %vm463, %v48, 0
    %v468 = vsel %vm463, %v49, 0
    %v471 = vsel %vm463, %v50, 0
    %v474 = vsel %vm463, %v51, 0
    %v477 = vsel %vm463, %v52, 0
    %v480 = vsel %vm463, %v53, 0
    %v483 = vsel %vm463, %v54, 0
    %v486 = vsel %vm463, %v55, 0
    %v489 = vsel %vm463, %v56, 0
    %v492 = vsel %vm463, %v57, 0
    %v495 = vsel %vm463, %v58, 0
    %v498 = vsel %vm463, %v59, 0
    %v501 = vsel %vm463, %v60, 0
    %v504 = vsel %vm463, %v61, 0
    %v507 = vsel %vm463, %v62, 0
    %v510 = vsel %vm463, %v63, 0
    %512 = vmatprep.subr.mxu0 %v65
    %513 = vmatpush1.msra.mxu0 %v64
    %514 = vmatprep.subr.mxu0 %v69
    %515 = vmatpush1.msra.mxu0 %v68
    %516 = vmatprep.subr.mxu0 0.0
    %517 = vmatpush1.msra.mxu0 0.0
    %518 = vmatprep.subr.mxu0 0.0
    %519 = vmatpush1.msra.mxu0 0.0
    %520 = vmatprep.subr.mxu0 0.0
    %521 = vmatpush1.msra.mxu0 0.0
    %522 = vmatprep.subr.mxu0 0.0
    %523 = vmatpush1.msra.mxu0 0.0
    %524 = vmatprep.subr.mxu0 0.0
    %525 = vmatpush1.msra.mxu0 0.0
    %526 = vmatprep.subr.mxu0 0.0
    %527 = vmatpush1.msra.mxu0 0.0
    %528 = vmatprep.subr.mxu0 0.0
    %529 = vmatpush1.msra.mxu0 0.0
    %530 = vmatprep.subr.mxu0 0.0
    %531 = vmatpush1.msra.mxu0 0.0
    %532 = vmatprep.subr.mxu0 0.0
    %533 = vmatpush1.msra.mxu0 0.0
    %534 = vmatprep.subr.mxu0 0.0
    %535 = vmatpush1.msra.mxu0 0.0
    %536 = vmatprep.subr.mxu0 0.0
    %537 = vmatpush1.msra.mxu0 0.0
    %538 = vmatprep.subr.mxu0 0.0
    %539 = vmatpush1.msra.mxu0 0.0
    %540 = vmatprep.subr.mxu0 0.0
    %541 = vmatpush1.msra.mxu0 0.0
    %542 = vmatprep.subr.mxu0 0.0
    %543 = vmatpush1.msra.mxu0 0.0
    %544 = vmatprep.subr.mxu0 0.0
    %545 = vmatpush1.msra.mxu0 0.0
    %546 = vmatprep.subr.mxu0 0.0
    %547 = vmatpush1.msra.mxu0 0.0
    %548 = vmatprep.subr.mxu0 0.0
    %549 = vmatpush1.msra.mxu0 0.0
    %550 = vmatprep.subr.mxu0 0.0
    %551 = vmatpush1.msra.mxu0 0.0
    %552 = vmatprep.subr.mxu0 0.0
    %553 = vmatpush1.msra.mxu0 0.0
    %554 = vmatprep.subr.mxu0 0.0
    %555 = vmatpush1.msra.mxu0 0.0
    %556 = vmatprep.subr.mxu0 0.0
    %557 = vmatpush1.msra.mxu0 0.0
    %558 = vmatprep.subr.mxu0 0.0
    %559 = vmatpush1.msra.mxu0 0.0
    %560 = vmatprep.subr.mxu0 0.0
    %561 = vmatpush1.msra.mxu0 0.0
    %562 = vmatprep.subr.mxu0 0.0
    %563 = vmatpush1.msra.mxu0 0.0
    %564 = vmatprep.subr.mxu0 0.0
    %565 = vmatpush1.msra.mxu0 0.0
    %566 = vmatprep.subr.mxu0 0.0
    %567 = vmatpush1.msra.mxu0 0.0
    %568 = vmatprep.subr.mxu0 0.0
    %569 = vmatpush1.msra.mxu0 0.0
    %570 = vmatprep.subr.mxu0 0.0
    %571 = vmatpush1.msra.mxu0 0.0
    %572 = vmatprep.subr.mxu0 0.0
    %573 = vmatpush1.msra.mxu0 0.0
    %574 = vmatprep.subr.mxu0 0.0
    %575 = vmatpush1.msra.mxu0 0.0
    %576 = vmatprep.mubr.f32.mxu0 0.0
    %577 = vmatmul.mubr.f32.gmra.mrb[0].mxu0 %v465
    %v578 = vpop.f32.mrb[0].mxu0
    %v579 = vadd.f32 %v208, %v578
    %v580 = vpop.f32.mrb[0].mxu0
    %v581 = vadd.f32 %v210, %v580
    %582 = vmatprep.mubr.f32.mxu0 0.0
    %583 = vmatmul.mubr.f32.gmra.mrb[0].mxu0 %v468
    %v584 = vpop.f32.mrb[0].mxu0
    %v585 = vadd.f32 %v214, %v584
    %v586 = vpop.f32.mrb[0].mxu0
    %v587 = vadd.f32 %v216, %v586
    %588 = vmatprep.mubr.f32.mxu0 0.0
    %589 = vmatmul.mubr.f32.gmra.mrb[0].mxu0 %v471
    %v590 = vpop.f32.mrb[0].mxu0
    %v591 = vadd.f32 %v220, %v590
    %v592 = vpop.f32.mrb[0].mxu0
    %v593 = vadd.f32 %v222, %v592
    %594 = vmatprep.mubr.f32.mxu0 0.0
    %595 = vmatmul.mubr.f32.gmra.mrb[0].mxu0 %v474
    %v596 = vpop.f32.mrb[0].mxu0
    %v597 = vadd.f32 %v226, %v596
    %v598 = vpop.f32.mrb[0].mxu0
    %v599 = vadd.f32 %v228, %v598
    %600 = vmatprep.mubr.f32.mxu0 0.0
    %601 = vmatmul.mubr.f32.gmra.mrb[0].mxu0 %v477
    %v602 = vpop.f32.mrb[0].mxu0
    %v603 = vadd.f32 %v232, %v602
    %v604 = vpop.f32.mrb[0].mxu0
    %v605 = vadd.f32 %v234, %v604
    %606 = vmatprep.mubr.f32.mxu0 0.0
    %607 = vmatmul.mubr.f32.gmra.mrb[0].mxu0 %v480
    %v608 = vpop.f32.mrb[0].mxu0
    %v609 = vadd.f32 %v238, %v608
    %v610 = vpop.f32.mrb[0].mxu0
    %v611 = vadd.f32 %v240, %v610
    %612 = vmatprep.mubr.f32.mxu0 0.0
    %613 = vmatmul.mubr.f32.gmra.mrb[0].mxu0 %v483
    %v614 = vpop.f32.mrb[0].mxu0
    %v615 = vadd.f32 %v244, %v614
    %v616 = vpop.f32.mrb[0].mxu0
    %v617 = vadd.f32 %v246, %v616
    %618 = vmatprep.mubr.f32.mxu0 0.0
    %619 = vmatmul.mubr.f32.gmra.mrb[0].mxu0 %v486
    %v620 = vpop.f32.mrb[0].mxu0
    %v621 = vadd.f32 %v250, %v620
    %v622 = vpop.f32.mrb[0].mxu0
    %v623 = vadd.f32 %v252, %v622
    %624 = vmatprep.mubr.f32.mxu0 0.0
    %625 = vmatmul.mubr.f32.gmra.mrb[0].mxu0 %v489
    %v626 = vpop.f32.mrb[0].mxu0
    %v627 = vadd.f32 %v256, %v626
    %v628 = vpop.f32.mrb[0].mxu0
    %v629 = vadd.f32 %v258, %v628
    %630 = vmatprep.mubr.f32.mxu0 0.0
    %631 = vmatmul.mubr.f32.gmra.mrb[0].mxu0 %v492
    %v632 = vpop.f32.mrb[0].mxu0
    %v633 = vadd.f32 %v262, %v632
    %v634 = vpop.f32.mrb[0].mxu0
    %v635 = vadd.f32 %v264, %v634
    %636 = vmatprep.mubr.f32.mxu0 0.0
    %637 = vmatmul.mubr.f32.gmra.mrb[0].mxu0 %v495
    %v638 = vpop.f32.mrb[0].mxu0
    %v639 = vadd.f32 %v268, %v638
    %v640 = vpop.f32.mrb[0].mxu0
    %v641 = vadd.f32 %v270, %v640
    %642 = vmatprep.mubr.f32.mxu0 0.0
    %643 = vmatmul.mubr.f32.gmra.mrb[0].mxu0 %v498
    %v644 = vpop.f32.mrb[0].mxu0
    %v645 = vadd.f32 %v274, %v644
    %v646 = vpop.f32.mrb[0].mxu0
    %v647 = vadd.f32 %v276, %v646
    %648 = vmatprep.mubr.f32.mxu0 0.0
    %649 = vmatmul.mubr.f32.gmra.mrb[0].mxu0 %v501
    %v650 = vpop.f32.mrb[0].mxu0
    %v651 = vadd.f32 %v280, %v650
    %v652 = vpop.f32.mrb[0].mxu0
    %v653 = vadd.f32 %v282, %v652
    %654 = vmatprep.mubr.f32.mxu0 0.0
    %655 = vmatmul.mubr.f32.gmra.mrb[0].mxu0 %v504
    %v656 = vpop.f32.mrb[0].mxu0
    %v657 = vadd.f32 %v286, %v656
    %v658 = vpop.f32.mrb[0].mxu0
    %v659 = vadd.f32 %v288, %v658
    %660 = vmatprep.mubr.f32.mxu0 0.0
    %661 = vmatmul.mubr.f32.gmra.mrb[0].mxu0 %v507
    %v662 = vpop.f32.mrb[0].mxu0
    %v663 = vadd.f32 %v292, %v662
    %v664 = vpop.f32.mrb[0].mxu0
    %v665 = vadd.f32 %v294, %v664
    %666 = vmatprep.mubr.f32.mxu0 0.0
    %667 = vmatmul.mubr.f32.gmra.mrb[0].mxu0 %v510
    %v668 = vpop.f32.mrb[0].mxu0
    %v669 = vadd.f32 %v298, %v668
    %v670 = vpop.f32.mrb[0].mxu0
    %v671 = vadd.f32 %v300, %v670
    %672 = vdwg.mxu0
    %673 = vmatprep.subr.mxu0 %v67
    %674 = vmatpush1.msra.mxu0 %v66
    %675 = vmatprep.subr.mxu0 %v71
    %676 = vmatpush1.msra.mxu0 %v70
    %677 = vmatprep.subr.mxu0 0.0
    %678 = vmatpush1.msra.mxu0 0.0
    %679 = vmatprep.subr.mxu0 0.0
    %680 = vmatpush1.msra.mxu0 0.0
    %681 = vmatprep.subr.mxu0 0.0
    %682 = vmatpush1.msra.mxu0 0.0
    %683 = vmatprep.subr.mxu0 0.0
    %684 = vmatpush1.msra.mxu0 0.0
    %685 = vmatprep.subr.mxu0 0.0
    %686 = vmatpush1.msra.mxu0 0.0
    %687 = vmatprep.subr.mxu0 0.0
    %688 = vmatpush1.msra.mxu0 0.0
    %689 = vmatprep.subr.mxu0 0.0
    %690 = vmatpush1.msra.mxu0 0.0
    %691 = vmatprep.subr.mxu0 0.0
    %692 = vmatpush1.msra.mxu0 0.0
    %693 = vmatprep.subr.mxu0 0.0
    %694 = vmatpush1.msra.mxu0 0.0
    %695 = vmatprep.subr.mxu0 0.0
    %696 = vmatpush1.msra.mxu0 0.0
    %697 = vmatprep.subr.mxu0 0.0
    %698 = vmatpush1.msra.mxu0 0.0
    %699 = vmatprep.subr.mxu0 0.0
    %700 = vmatpush1.msra.mxu0 0.0
    %701 = vmatprep.subr.mxu0 0.0
    %702 = vmatpush1.msra.mxu0 0.0
    %703 = vmatprep.subr.mxu0 0.0
    %704 = vmatpush1.msra.mxu0 0.0
    %705 = vmatprep.subr.mxu0 0.0
    %706 = vmatpush1.msra.mxu0 0.0
    %707 = vmatprep.subr.mxu0 0.0
    %708 = vmatpush1.msra.mxu0 0.0
    %709 = vmatprep.subr.mxu0 0.0
    %710 = vmatpush1.msra.mxu0 0.0
    %711 = vmatprep.subr.mxu0 0.0
    %712 = vmatpush1.msra.mxu0 0.0
    %713 = vmatprep.subr.mxu0 0.0
    %714 = vmatpush1.msra.mxu0 0.0
    %715 = vmatprep.subr.mxu0 0.0
    %716 = vmatpush1.msra.mxu0 0.0
    %717 = vmatprep.subr.mxu0 0.0
    %718 = vmatpush1.msra.mxu0 0.0
    %719 = vmatprep.subr.mxu0 0.0
    %720 = vmatpush1.msra.mxu0 0.0
    %721 = vmatprep.subr.mxu0 0.0
    %722 = vmatpush1.msra.mxu0 0.0
    %723 = vmatprep.subr.mxu0 0.0
    %724 = vmatpush1.msra.mxu0 0.0
    %725 = vmatprep.subr.mxu0 0.0
    %726 = vmatpush1.msra.mxu0 0.0
    %727 = vmatprep.subr.mxu0 0.0
    %728 = vmatpush1.msra.mxu0 0.0
    %729 = vmatprep.subr.mxu0 0.0
    %730 = vmatpush1.msra.mxu0 0.0
    %731 = vmatprep.subr.mxu0 0.0
    %732 = vmatpush1.msra.mxu0 0.0
    %733 = vmatprep.subr.mxu0 0.0
    %734 = vmatpush1.msra.mxu0 0.0
    %735 = vmatprep.subr.mxu0 0.0
    %736 = vmatpush1.msra.mxu0 0.0
    %737 = vmatprep.mubr.f32.mxu0 0.0
    %738 = vmatmul.mubr.f32.gmra.mrb[0].mxu0 %v465
    %v739 = vpop.f32.mrb[0].mxu0
    %v740 = vadd.f32 %v369, %v739
    %v741 = vpop.f32.mrb[0].mxu0
    %v742 = vadd.f32 %v371, %v741
    %743 = vmatprep.mubr.f32.mxu0 0.0
    %744 = vmatmul.mubr.f32.gmra.mrb[0].mxu0 %v468
    %v745 = vpop.f32.mrb[0].mxu0
    %v746 = vadd.f32 %v375, %v745
    %v747 = vpop.f32.mrb[0].mxu0
    %v748 = vadd.f32 %v377, %v747
    %749 = vmatprep.mubr.f32.mxu0 0.0
    %750 = vmatmul.mubr.f32.gmra.mrb[0].mxu0 %v471
    %v751 = vpop.f32.mrb[0].mxu0
    %v752 = vadd.f32 %v381, %v751
    %v753 = vpop.f32.mrb[0].mxu0
    %v754 = vadd.f32 %v383, %v753
    %755 = vmatprep.mubr.f32.mxu0 0.0
    %756 = vmatmul.mubr.f32.gmra.mrb[0].mxu0 %v474
    %v757 = vpop.f32.mrb[0].mxu0
    %v758 = vadd.f32 %v387, %v757
    %v759 = vpop.f32.mrb[0].mxu0
    %v760 = vadd.f32 %v389, %v759
    %761 = vmatprep.mubr.f32.mxu0 0.0
    %762 = vmatmul.mubr.f32.gmra.mrb[0].mxu0 %v477
    %v763 = vpop.f32.mrb[0].mxu0
    %v764 = vadd.f32 %v393, %v763
    %v765 = vpop.f32.mrb[0].mxu0
    %v766 = vadd.f32 %v395, %v765
    %767 = vmatprep.mubr.f32.mxu0 0.0
    %768 = vmatmul.mubr.f32.gmra.mrb[0].mxu0 %v480
    %v769 = vpop.f32.mrb[0].mxu0
    %v770 = vadd.f32 %v399, %v769
    %v771 = vpop.f32.mrb[0].mxu0
    %v772 = vadd.f32 %v401, %v771
    %773 = vmatprep.mubr.f32.mxu0 0.0
    %774 = vmatmul.mubr.f32.gmra.mrb[0].mxu0 %v483
    %v775 = vpop.f32.mrb[0].mxu0
    %v776 = vadd.f32 %v405, %v775
    %v777 = vpop.f32.mrb[0].mxu0
    %v778 = vadd.f32 %v407, %v777
    %779 = vmatprep.mubr.f32.mxu0 0.0
    %780 = vmatmul.mubr.f32.gmra.mrb[0].mxu0 %v486
    %v781 = vpop.f32.mrb[0].mxu0
    %v782 = vadd.f32 %v411, %v781
    %v783 = vpop.f32.mrb[0].mxu0
    %v784 = vadd.f32 %v413, %v783
    %785 = vmatprep.mubr.f32.mxu0 0.0
    %786 = vmatmul.mubr.f32.gmra.mrb[0].mxu0 %v489
    %v787 = vpop.f32.mrb[0].mxu0
    %v788 = vadd.f32 %v417, %v787
    %v789 = vpop.f32.mrb[0].mxu0
    %v790 = vadd.f32 %v419, %v789
    %791 = vmatprep.mubr.f32.mxu0 0.0
    %792 = vmatmul.mubr.f32.gmra.mrb[0].mxu0 %v492
    %v793 = vpop.f32.mrb[0].mxu0
    %v794 = vadd.f32 %v423, %v793
    %v795 = vpop.f32.mrb[0].mxu0
    %v796 = vadd.f32 %v425, %v795
    %797 = vmatprep.mubr.f32.mxu0 0.0
    %798 = vmatmul.mubr.f32.gmra.mrb[0].mxu0 %v495
    %v799 = vpop.f32.mrb[0].mxu0
    %v800 = vadd.f32 %v429, %v799
    %v801 = vpop.f32.mrb[0].mxu0
    %v802 = vadd.f32 %v431, %v801
    %803 = vmatprep.mubr.f32.mxu0 0.0
    %804 = vmatmul.mubr.f32.gmra.mrb[0].mxu0 %v498
    %v805 = vpop.f32.mrb[0].mxu0
    %v806 = vadd.f32 %v435, %v805
    %v807 = vpop.f32.mrb[0].mxu0
    %v808 = vadd.f32 %v437, %v807
    %809 = vmatprep.mubr.f32.mxu0 0.0
    %810 = vmatmul.mubr.f32.gmra.mrb[0].mxu0 %v501
    %v811 = vpop.f32.mrb[0].mxu0
    %v812 = vadd.f32 %v441, %v811
    %v813 = vpop.f32.mrb[0].mxu0
    %v814 = vadd.f32 %v443, %v813
    %815 = vmatprep.mubr.f32.mxu0 0.0
    %816 = vmatmul.mubr.f32.gmra.mrb[0].mxu0 %v504
    %v817 = vpop.f32.mrb[0].mxu0
    %v818 = vadd.f32 %v447, %v817
    %v819 = vpop.f32.mrb[0].mxu0
    %v820 = vadd.f32 %v449, %v819
    %821 = vmatprep.mubr.f32.mxu0 0.0
    %822 = vmatmul.mubr.f32.gmra.mrb[0].mxu0 %v507
    %v823 = vpop.f32.mrb[0].mxu0
    %v824 = vadd.f32 %v453, %v823
    %v825 = vpop.f32.mrb[0].mxu0
    %v826 = vadd.f32 %v455, %v825
    %827 = vmatprep.mubr.f32.mxu0 0.0
    %828 = vmatmul.mubr.f32.gmra.mrb[0].mxu0 %v510
    %v829 = vpop.f32.mrb[0].mxu0
    %v830 = vadd.f32 %v459, %v829
    %v831 = vpop.f32.mrb[0].mxu0
    %v832 = vadd.f32 %v461, %v831
    %833 = vdwg.mxu0
    %v834 = vld [vmem:[%s4] sm:$0xf]
    %v836 = vlaneseq
    %v837 = vshrl.u32 %v836, 7
    %v838 = vsub.s32 0, %v837
    %v839 = vrot.slane %v834, %v838
    %v840 = vlaneseq
    %v841 = vshrl.u32 %v840, 7
    %v842 = vsub.s32 1, %v841
    %v843 = vrot.slane %v834, %v842
    %v844 = vlaneseq
    %v845 = vshrl.u32 %v844, 7
    %v846 = vsub.s32 2, %v845
    %v847 = vrot.slane %v834, %v846
    %v848 = vlaneseq
    %v849 = vshrl.u32 %v848, 7
    %v850 = vsub.s32 3, %v849
    %v851 = vrot.slane %v834, %v850
    %v856 = vadd.f32 %v579, %v839
    %v857 = vadd.f32 %v581, %v843
    %v858 = vadd.f32 %v740, %v847
    %v859 = vadd.f32 %v742, %v851
    %v860 = vadd.f32 %v585, %v839
    %v861 = vadd.f32 %v587, %v843
    %v862 = vadd.f32 %v746, %v847
    %v863 = vadd.f32 %v748, %v851
    %v864 = vadd.f32 %v591, %v839
    %v865 = vadd.f32 %v593, %v843
    %v866 = vadd.f32 %v752, %v847
    %v867 = vadd.f32 %v754, %v851
    %v868 = vadd.f32 %v597, %v839
    %v869 = vadd.f32 %v599, %v843
    %v870 = vadd.f32 %v758, %v847
    %v871 = vadd.f32 %v760, %v851
    %v872 = vadd.f32 %v603, %v839
    %v873 = vadd.f32 %v605, %v843
    %v874 = vadd.f32 %v764, %v847
    %v875 = vadd.f32 %v766, %v851
    %v876 = vadd.f32 %v609, %v839
    %v877 = vadd.f32 %v611, %v843
    %v878 = vadd.f32 %v770, %v847
    %v879 = vadd.f32 %v772, %v851
    %v880 = vadd.f32 %v615, %v839
    %v881 = vadd.f32 %v617, %v843
    %v882 = vadd.f32 %v776, %v847
    %v883 = vadd.f32 %v778, %v851
    %v884 = vadd.f32 %v621, %v839
    %v885 = vadd.f32 %v623, %v843
    %v886 = vadd.f32 %v782, %v847
    %v887 = vadd.f32 %v784, %v851
    %v888 = vadd.f32 %v627, %v839
    %v889 = vadd.f32 %v629, %v843
    %v890 = vadd.f32 %v788, %v847
    %v891 = vadd.f32 %v790, %v851
    %v892 = vadd.f32 %v633, %v839
    %v893 = vadd.f32 %v635, %v843
    %v894 = vadd.f32 %v794, %v847
    %v895 = vadd.f32 %v796, %v851
    %v896 = vadd.f32 %v639, %v839
    %v897 = vadd.f32 %v641, %v843
    %v898 = vadd.f32 %v800, %v847
    %v899 = vadd.f32 %v802, %v851
    %v900 = vadd.f32 %v645, %v839
    %v901 = vadd.f32 %v647, %v843
    %v902 = vadd.f32 %v806, %v847
    %v903 = vadd.f32 %v808, %v851
    %v904 = vadd.f32 %v651, %v839
    %v905 = vadd.f32 %v653, %v843
    %v906 = vadd.f32 %v812, %v847
    %v907 = vadd.f32 %v814, %v851
    %v908 = vadd.f32 %v657, %v839
    %v909 = vadd.f32 %v659, %v843
    %v910 = vadd.f32 %v818, %v847
    %v911 = vadd.f32 %v820, %v851
    %v912 = vadd.f32 %v663, %v839
    %v913 = vadd.f32 %v665, %v843
    %v914 = vadd.f32 %v824, %v847
    %v915 = vadd.f32 %v826, %v851
    %v916 = vadd.f32 %v669, %v839
    %v917 = vadd.f32 %v671, %v843
    %v918 = vadd.f32 %v830, %v847
    %v919 = vadd.f32 %v832, %v851
    %v920 = vmax.f32 %v856, 0.0
    %v921 = vmax.f32 %v857, 0.0
    %v922 = vmax.f32 %v858, 0.0
    %v923 = vmax.f32 %v859, 0.0
    %v924 = vmax.f32 %v860, 0.0
    %v925 = vmax.f32 %v861, 0.0
    %v926 = vmax.f32 %v862, 0.0
    %v927 = vmax.f32 %v863, 0.0
    %v928 = vmax.f32 %v864, 0.0
    %v929 = vmax.f32 %v865, 0.0
    %v930 = vmax.f32 %v866, 0.0
    %v931 = vmax.f32 %v867, 0.0
    %v932 = vmax.f32 %v868, 0.0
    %v933 = vmax.f32 %v869, 0.0
    %v934 = vmax.f32 %v870, 0.0
    %v935 = vmax.f32 %v871, 0.0
    %v936 = vmax.f32 %v872, 0.0
    %v937 = vmax.f32 %v873, 0.0
    %v938 = vmax.f32 %v874, 0.0
    %v939 = vmax.f32 %v875, 0.0
    %v940 = vmax.f32 %v876, 0.0
    %v941 = vmax.f32 %v877, 0.0
    %v942 = vmax.f32 %v878, 0.0
    %v943 = vmax.f32 %v879, 0.0
    %v944 = vmax.f32 %v880, 0.0
    %v945 = vmax.f32 %v881, 0.0
    %v946 = vmax.f32 %v882, 0.0
    %v947 = vmax.f32 %v883, 0.0
    %v948 = vmax.f32 %v884, 0.0
    %v949 = vmax.f32 %v885, 0.0
    %v950 = vmax.f32 %v886, 0.0
    %v951 = vmax.f32 %v887, 0.0
    %v952 = vmax.f32 %v888, 0.0
    %v953 = vmax.f32 %v889, 0.0
    %v954 = vmax.f32 %v890, 0.0
    %v955 = vmax.f32 %v891, 0.0
    %v956 = vmax.f32 %v892, 0.0
    %v957 = vmax.f32 %v893, 0.0
    %v958 = vmax.f32 %v894, 0.0
    %v959 = vmax.f32 %v895, 0.0
    %v960 = vmax.f32 %v896, 0.0
    %v961 = vmax.f32 %v897, 0.0
    %v962 = vmax.f32 %v898, 0.0
    %v963 = vmax.f32 %v899, 0.0
    %v964 = vmax.f32 %v900, 0.0
    %v965 = vmax.f32 %v901, 0.0
    %v966 = vmax.f32 %v902, 0.0
    %v967 = vmax.f32 %v903, 0.0
    %v968 = vmax.f32 %v904, 0.0
    %v969 = vmax.f32 %v905, 0.0
    %v970 = vmax.f32 %v906, 0.0
    %v971 = vmax.f32 %v907, 0.0
    %v972 = vmax.f32 %v908, 0.0
    %v973 = vmax.f32 %v909, 0.0
    %v974 = vmax.f32 %v910, 0.0
    %v975 = vmax.f32 %v911, 0.0
    %v976 = vmax.f32 %v912, 0.0
    %v977 = vmax.f32 %v913, 0.0
    %v978 = vmax.f32 %v914, 0.0
    %v979 = vmax.f32 %v915, 0.0
    %v980 = vmax.f32 %v916, 0.0
    %v981 = vmax.f32 %v917, 0.0
    %v982 = vmax.f32 %v918, 0.0
    %v983 = vmax.f32 %v919, 0.0
    %v984 = vld [vmem:[#allocation3] sm:$0xff]
    %v985 = vld [vmem:[#allocation3 + $0x8] sm:$0xff]
    %v986 = vld [vmem:[#allocation3 + $0x10] sm:$0xff]
    %v987 = vld [vmem:[#allocation3 + $0x18] sm:$0xff]
    %v988 = vld [vmem:[#allocation3 + $0x20] sm:$0xff]
    %v989 = vld [vmem:[#allocation3 + $0x28] sm:$0xff]
    %v990 = vld [vmem:[#allocation3 + $0x30] sm:$0xff]
    %v991 = vld [vmem:[#allocation3 + $0x38] sm:$0xff]
    %v992 = vld [vmem:[#allocation3 + $0x40] sm:$0xff]
    %v993 = vld [vmem:[#allocation3 + $0x48] sm:$0xff]
    %v994 = vld [vmem:[#allocation3 + $0x50] sm:$0xff]
    %v995 = vld [vmem:[#allocation3 + $0x58] sm:$0xff]
    %v996 = vld [vmem:[#allocation3 + $0x60] sm:$0xff]
    %v997 = vld [vmem:[#allocation3 + $0x68] sm:$0xff]
    %v998 = vld [vmem:[#allocation3 + $0x70] sm:$0xff]
    %v999 = vld [vmem:[#allocation3 + $0x78] sm:$0xff]
    %v1000 = vld [vmem:[#allocation3 + $0x80] sm:$0xff]
    %v1001 = vld [vmem:[#allocation3 + $0x88] sm:$0xff]
    %v1002 = vld [vmem:[#allocation3 + $0x90] sm:$0xff]
    %v1003 = vld [vmem:[#allocation3 + $0x98] sm:$0xff]
    %v1004 = vld [vmem:[#allocation3 + $0xa0] sm:$0xff]
    %v1005 = vld [vmem:[#allocation3 + $0xa8] sm:$0xff]
    %v1006 = vld [vmem:[#allocation3 + $0xb0] sm:$0xff]
    %v1007 = vld [vmem:[#allocation3 + $0xb8] sm:$0xff]
    %v1008 = vld [vmem:[#allocation3 + $0xc0] sm:$0xff]
    %v1009 = vld [vmem:[#allocation3 + $0xc8] sm:$0xff]
    %v1010 = vld [vmem:[#allocation3 + $0xd0] sm:$0xff]
    %v1011 = vld [vmem:[#allocation3 + $0xd8] sm:$0xff]
    %v1012 = vld [vmem:[#allocation3 + $0xe0] sm:$0xff]
    %v1013 = vld [vmem:[#allocation3 + $0xe8] sm:$0xff]
    %v1014 = vld [vmem:[#allocation3 + $0xf0] sm:$0xff]
    %v1015 = vld [vmem:[#allocation3 + $0xf8] sm:$0xff]
    %v1016 = vld [vmem:[#allocation3 + $0x100] sm:$0xff]
    %v1017 = vld [vmem:[#allocation3 + $0x108] sm:$0xff]
    %v1018 = vld [vmem:[#allocation3 + $0x110] sm:$0xff]
    %v1019 = vld [vmem:[#allocation3 + $0x118] sm:$0xff]
    %v1020 = vld [vmem:[#allocation3 + $0x120] sm:$0xff]
    %v1021 = vld [vmem:[#allocation3 + $0x128] sm:$0xff]
    %v1022 = vld [vmem:[#allocation3 + $0x130] sm:$0xff]
    %v1023 = vld [vmem:[#allocation3 + $0x138] sm:$0xff]
    %v1024 = vld [vmem:[#allocation3 + $0x140] sm:$0xff]
    %v1025 = vld [vmem:[#allocation3 + $0x148] sm:$0xff]
    %v1026 = vld [vmem:[#allocation3 + $0x150] sm:$0xff]
    %v1027 = vld [vmem:[#allocation3 + $0x158] sm:$0xff]
    %v1028 = vld [vmem:[#allocation3 + $0x160] sm:$0xff]
    %v1029 = vld [vmem:[#allocation3 + $0x168] sm:$0xff]
    %v1030 = vld [vmem:[#allocation3 + $0x170] sm:$0xff]
    %v1031 = vld [vmem:[#allocation3 + $0x178] sm:$0xff]
    %v1032 = vld [vmem:[#allocation3 + $0x180] sm:$0xff]
    %v1033 = vld [vmem:[#allocation3 + $0x188] sm:$0xff]
    %v1034 = vld [vmem:[#allocation3 + $0x190] sm:$0xff]
    %v1035 = vld [vmem:[#allocation3 + $0x198] sm:$0xff]
    %v1036 = vld [vmem:[#allocation3 + $0x1a0] sm:$0xff]
    %v1037 = vld [vmem:[#allocation3 + $0x1a8] sm:$0xff]
    %v1038 = vld [vmem:[#allocation3 + $0x1b0] sm:$0xff]
    %v1039 = vld [vmem:[#allocation3 + $0x1b8] sm:$0xff]
    %v1040 = vld [vmem:[#allocation3 + $0x1c0] sm:$0xff]
    %v1041 = vld [vmem:[#allocation3 + $0x1c8] sm:$0xff]
    %v1042 = vld [vmem:[#allocation3 + $0x1d0] sm:$0xff]
    %v1043 = vld [vmem:[#allocation3 + $0x1d8] sm:$0xff]
    %v1044 = vld [vmem:[#allocation3 + $0x1e0] sm:$0xff]
    %v1045 = vld [vmem:[#allocation3 + $0x1e8] sm:$0xff]
    %v1046 = vld [vmem:[#allocation3 + $0x1f0] sm:$0xff]
    %v1047 = vld [vmem:[#allocation3 + $0x1f8] sm:$0xff]
    %v1048 = vld [vmem:[#allocation3 + $0x200] sm:$0xff]
    %v1049 = vld [vmem:[#allocation3 + $0x208] sm:$0xff]
    %v1050 = vld [vmem:[#allocation3 + $0x210] sm:$0xff]
    %v1051 = vld [vmem:[#allocation3 + $0x218] sm:$0xff]
    %v1052 = vld [vmem:[#allocation3 + $0x220] sm:$0xff]
    %v1053 = vld [vmem:[#allocation3 + $0x228] sm:$0xff]
    %v1054 = vld [vmem:[#allocation3 + $0x230] sm:$0xff]
    %v1055 = vld [vmem:[#allocation3 + $0x238] sm:$0xff]
    %v1056 = vld [vmem:[#allocation3 + $0x240] sm:$0xff]
    %v1057 = vld [vmem:[#allocation3 + $0x248] sm:$0xff]
    %v1058 = vld [vmem:[#allocation3 + $0x250] sm:$0xff]
    %v1059 = vld [vmem:[#allocation3 + $0x258] sm:$0xff]
    %v1060 = vld [vmem:[#allocation3 + $0x260] sm:$0xff]
    %v1061 = vld [vmem:[#allocation3 + $0x268] sm:$0xff]
    %v1062 = vld [vmem:[#allocation3 + $0x270] sm:$0xff]
    %v1063 = vld [vmem:[#allocation3 + $0x278] sm:$0xff]
    %v1064 = vld [vmem:[#allocation3 + $0x280] sm:$0xff]
    %v1065 = vld [vmem:[#allocation3 + $0x288] sm:$0xff]
    %v1066 = vld [vmem:[#allocation3 + $0x290] sm:$0xff]
    %v1067 = vld [vmem:[#allocation3 + $0x298] sm:$0xff]
    %v1068 = vld [vmem:[#allocation3 + $0x2a0] sm:$0xff]
    %v1069 = vld [vmem:[#allocation3 + $0x2a8] sm:$0xff]
    %v1070 = vld [vmem:[#allocation3 + $0x2b0] sm:$0xff]
    %v1071 = vld [vmem:[#allocation3 + $0x2b8] sm:$0xff]
    %v1072 = vld [vmem:[#allocation3 + $0x2c0] sm:$0xff]
    %v1073 = vld [vmem:[#allocation3 + $0x2c8] sm:$0xff]
    %v1074 = vld [vmem:[#allocation3 + $0x2d0] sm:$0xff]
    %v1075 = vld [vmem:[#allocation3 + $0x2d8] sm:$0xff]
    %v1076 = vld [vmem:[#allocation3 + $0x2e0] sm:$0xff]
    %v1077 = vld [vmem:[#allocation3 + $0x2e8] sm:$0xff]
    %v1078 = vld [vmem:[#allocation3 + $0x2f0] sm:$0xff]
    %v1079 = vld [vmem:[#allocation3 + $0x2f8] sm:$0xff]
    %v1080 = vld [vmem:[#allocation3 + $0x300] sm:$0xff]
    %v1081 = vld [vmem:[#allocation3 + $0x308] sm:$0xff]
    %v1082 = vld [vmem:[#allocation3 + $0x310] sm:$0xff]
    %v1083 = vld [vmem:[#allocation3 + $0x318] sm:$0xff]
    %v1084 = vld [vmem:[#allocation3 + $0x320] sm:$0xff]
    %v1085 = vld [vmem:[#allocation3 + $0x328] sm:$0xff]
    %v1086 = vld [vmem:[#allocation3 + $0x330] sm:$0xff]
    %v1087 = vld [vmem:[#allocation3 + $0x338] sm:$0xff]
    %v1088 = vld [vmem:[#allocation3 + $0x340] sm:$0xff]
    %v1089 = vld [vmem:[#allocation3 + $0x348] sm:$0xff]
    %v1090 = vld [vmem:[#allocation3 + $0x350] sm:$0xff]
    %v1091 = vld [vmem:[#allocation3 + $0x358] sm:$0xff]
    %v1092 = vld [vmem:[#allocation3 + $0x360] sm:$0xff]
    %v1093 = vld [vmem:[#allocation3 + $0x368] sm:$0xff]
    %v1094 = vld [vmem:[#allocation3 + $0x370] sm:$0xff]
    %v1095 = vld [vmem:[#allocation3 + $0x378] sm:$0xff]
    %v1096 = vld [vmem:[#allocation3 + $0x380] sm:$0xff]
    %v1097 = vld [vmem:[#allocation3 + $0x388] sm:$0xff]
    %v1098 = vld [vmem:[#allocation3 + $0x390] sm:$0xff]
    %v1099 = vld [vmem:[#allocation3 + $0x398] sm:$0xff]
    %v1100 = vld [vmem:[#allocation3 + $0x3a0] sm:$0xff]
    %v1101 = vld [vmem:[#allocation3 + $0x3a8] sm:$0xff]
    %v1102 = vld [vmem:[#allocation3 + $0x3b0] sm:$0xff]
    %v1103 = vld [vmem:[#allocation3 + $0x3b8] sm:$0xff]
    %v1104 = vld [vmem:[#allocation3 + $0x3c0] sm:$0xff]
    %v1105 = vld [vmem:[#allocation3 + $0x3c8] sm:$0xff]
    %v1106 = vld [vmem:[#allocation3 + $0x3d0] sm:$0xff]
    %v1107 = vld [vmem:[#allocation3 + $0x3d8] sm:$0xff]
    %v1108 = vld [vmem:[#allocation3 + $0x3e0] sm:$0xff]
    %v1109 = vld [vmem:[#allocation3 + $0x3e8] sm:$0xff]
    %v1110 = vld [vmem:[#allocation3 + $0x3f0] sm:$0xff]
    %v1111 = vld [vmem:[#allocation3 + $0x3f8] sm:$0xff]
    %v1112 = vld [vmem:[#allocation3 + $0x400] sm:$0xff]
    %v1113 = vld [vmem:[#allocation3 + $0x408] sm:$0xff]
    %v1114 = vld [vmem:[#allocation3 + $0x410] sm:$0xff]
    %v1115 = vld [vmem:[#allocation3 + $0x418] sm:$0xff]
    %v1116 = vld [vmem:[#allocation3 + $0x420] sm:$0xff]
    %v1117 = vld [vmem:[#allocation3 + $0x428] sm:$0xff]
    %v1118 = vld [vmem:[#allocation3 + $0x430] sm:$0xff]
    %v1119 = vld [vmem:[#allocation3 + $0x438] sm:$0xff]
    %v1120 = vld [vmem:[#allocation3 + $0x440] sm:$0xff]
    %v1121 = vld [vmem:[#allocation3 + $0x448] sm:$0xff]
    %v1122 = vld [vmem:[#allocation3 + $0x450] sm:$0xff]
    %v1123 = vld [vmem:[#allocation3 + $0x458] sm:$0xff]
    %v1124 = vld [vmem:[#allocation3 + $0x460] sm:$0xff]
    %v1125 = vld [vmem:[#allocation3 + $0x468] sm:$0xff]
    %v1126 = vld [vmem:[#allocation3 + $0x470] sm:$0xff]
    %v1127 = vld [vmem:[#allocation3 + $0x478] sm:$0xff]
    %v1128 = vld [vmem:[#allocation3 + $0x480] sm:$0xff]
    %v1129 = vld [vmem:[#allocation3 + $0x488] sm:$0xff]
    %v1130 = vld [vmem:[#allocation3 + $0x490] sm:$0xff]
    %v1131 = vld [vmem:[#allocation3 + $0x498] sm:$0xff]
    %v1132 = vld [vmem:[#allocation3 + $0x4a0] sm:$0xff]
    %v1133 = vld [vmem:[#allocation3 + $0x4a8] sm:$0xff]
    %v1134 = vld [vmem:[#allocation3 + $0x4b0] sm:$0xff]
    %v1135 = vld [vmem:[#allocation3 + $0x4b8] sm:$0xff]
    %v1136 = vld [vmem:[#allocation3 + $0x4c0] sm:$0xff]
    %v1137 = vld [vmem:[#allocation3 + $0x4c8] sm:$0xff]
    %v1138 = vld [vmem:[#allocation3 + $0x4d0] sm:$0xff]
    %v1139 = vld [vmem:[#allocation3 + $0x4d8] sm:$0xff]
    %v1140 = vld [vmem:[#allocation3 + $0x4e0] sm:$0xff]
    %v1141 = vld [vmem:[#allocation3 + $0x4e8] sm:$0xff]
    %v1142 = vld [vmem:[#allocation3 + $0x4f0] sm:$0xff]
    %v1143 = vld [vmem:[#allocation3 + $0x4f8] sm:$0xff]
    %v1144 = vld [vmem:[#allocation3 + $0x500] sm:$0xff]
    %v1145 = vld [vmem:[#allocation3 + $0x508] sm:$0xff]
    %v1146 = vld [vmem:[#allocation3 + $0x510] sm:$0xff]
    %v1147 = vld [vmem:[#allocation3 + $0x518] sm:$0xff]
    %v1148 = vld [vmem:[#allocation3 + $0x520] sm:$0xff]
    %v1149 = vld [vmem:[#allocation3 + $0x528] sm:$0xff]
    %v1150 = vld [vmem:[#allocation3 + $0x530] sm:$0xff]
    %v1151 = vld [vmem:[#allocation3 + $0x538] sm:$0xff]
    %v1152 = vld [vmem:[#allocation3 + $0x540] sm:$0xff]
    %v1153 = vld [vmem:[#allocation3 + $0x548] sm:$0xff]
    %v1154 = vld [vmem:[#allocation3 + $0x550] sm:$0xff]
    %v1155 = vld [vmem:[#allocation3 + $0x558] sm:$0xff]
    %v1156 = vld [vmem:[#allocation3 + $0x560] sm:$0xff]
    %v1157 = vld [vmem:[#allocation3 + $0x568] sm:$0xff]
    %v1158 = vld [vmem:[#allocation3 + $0x570] sm:$0xff]
    %v1159 = vld [vmem:[#allocation3 + $0x578] sm:$0xff]
    %v1160 = vld [vmem:[#allocation3 + $0x580] sm:$0xff]
    %v1161 = vld [vmem:[#allocation3 + $0x588] sm:$0xff]
    %v1162 = vld [vmem:[#allocation3 + $0x590] sm:$0xff]
    %v1163 = vld [vmem:[#allocation3 + $0x598] sm:$0xff]
    %v1164 = vld [vmem:[#allocation3 + $0x5a0] sm:$0xff]
    %v1165 = vld [vmem:[#allocation3 + $0x5a8] sm:$0xff]
    %v1166 = vld [vmem:[#allocation3 + $0x5b0] sm:$0xff]
    %v1167 = vld [vmem:[#allocation3 + $0x5b8] sm:$0xff]
    %v1168 = vld [vmem:[#allocation3 + $0x5c0] sm:$0xff]
    %v1169 = vld [vmem:[#allocation3 + $0x5c8] sm:$0xff]
    %v1170 = vld [vmem:[#allocation3 + $0x5d0] sm:$0xff]
    %v1171 = vld [vmem:[#allocation3 + $0x5d8] sm:$0xff]
    %v1172 = vld [vmem:[#allocation3 + $0x5e0] sm:$0xff]
    %v1173 = vld [vmem:[#allocation3 + $0x5e8] sm:$0xff]
    %v1174 = vld [vmem:[#allocation3 + $0x5f0] sm:$0xff]
    %v1175 = vld [vmem:[#allocation3 + $0x5f8] sm:$0xff]
    %v1176 = vld [vmem:[%s6] sm:$0x7]
    %v1178 = vlaneseq
    %v1179 = vshrl.u32 %v1178, 7
    %v1180 = vsub.s32 0, %v1179
    %v1181 = vrot.slane %v1176, %v1180
    %v1182 = vlaneseq
    %v1183 = vshrl.u32 %v1182, 7
    %v1184 = vsub.s32 1, %v1183
    %v1185 = vrot.slane %v1176, %v1184
    %v1186 = vlaneseq
    %v1187 = vshrl.u32 %v1186, 7
    %v1188 = vsub.s32 2, %v1187
    %v1189 = vrot.slane %v1176, %v1188
    %1193 = vmatprep.subr.mxu0 %v985
    %1194 = vmatpush1.msra.mxu0 %v984
    %1195 = vmatprep.subr.mxu0 %v988
    %1196 = vmatpush1.msra.mxu0 %v987
    %1197 = vmatprep.subr.mxu0 %v991
    %1198 = vmatpush1.msra.mxu0 %v990
    %1199 = vmatprep.subr.mxu0 %v994
    %1200 = vmatpush1.msra.mxu0 %v993
    %1201 = vmatprep.subr.mxu0 %v997
    %1202 = vmatpush1.msra.mxu0 %v996
    %1203 = vmatprep.subr.mxu0 %v1000
    %1204 = vmatpush1.msra.mxu0 %v999
    %1205 = vmatprep.subr.mxu0 %v1003
    %1206 = vmatpush1.msra.mxu0 %v1002
    %1207 = vmatprep.subr.mxu0 %v1006
    %1208 = vmatpush1.msra.mxu0 %v1005
    %1209 = vmatprep.subr.mxu0 %v1009
    %1210 = vmatpush1.msra.mxu0 %v1008
    %1211 = vmatprep.subr.mxu0 %v1012
    %1212 = vmatpush1.msra.mxu0 %v1011
    %1213 = vmatprep.subr.mxu0 %v1015
    %1214 = vmatpush1.msra.mxu0 %v1014
    %1215 = vmatprep.subr.mxu0 %v1018
    %1216 = vmatpush1.msra.mxu0 %v1017
    %1217 = vmatprep.subr.mxu0 %v1021
    %1218 = vmatpush1.msra.mxu0 %v1020
    %1219 = vmatprep.subr.mxu0 %v1024
    %1220 = vmatpush1.msra.mxu0 %v1023
    %1221 = vmatprep.subr.mxu0 %v1027
    %1222 = vmatpush1.msra.mxu0 %v1026
    %1223 = vmatprep.subr.mxu0 %v1030
    %1224 = vmatpush1.msra.mxu0 %v1029
    %1225 = vmatprep.subr.mxu0 %v1033
    %1226 = vmatpush1.msra.mxu0 %v1032
    %1227 = vmatprep.subr.mxu0 %v1036
    %1228 = vmatpush1.msra.mxu0 %v1035
    %1229 = vmatprep.subr.mxu0 %v1039
    %1230 = vmatpush1.msra.mxu0 %v1038
    %1231 = vmatprep.subr.mxu0 %v1042
    %1232 = vmatpush1.msra.mxu0 %v1041
    %1233 = vmatprep.subr.mxu0 %v1045
    %1234 = vmatpush1.msra.mxu0 %v1044
    %1235 = vmatprep.subr.mxu0 %v1048
    %1236 = vmatpush1.msra.mxu0 %v1047
    %1237 = vmatprep.subr.mxu0 %v1051
    %1238 = vmatpush1.msra.mxu0 %v1050
    %1239 = vmatprep.subr.mxu0 %v1054
    %1240 = vmatpush1.msra.mxu0 %v1053
    %1241 = vmatprep.subr.mxu0 %v1057
    %1242 = vmatpush1.msra.mxu0 %v1056
    %1243 = vmatprep.subr.mxu0 %v1060
    %1244 = vmatpush1.msra.mxu0 %v1059
    %1245 = vmatprep.subr.mxu0 %v1063
    %1246 = vmatpush1.msra.mxu0 %v1062
    %1247 = vmatprep.subr.mxu0 %v1066
    %1248 = vmatpush1.msra.mxu0 %v1065
    %1249 = vmatprep.subr.mxu0 %v1069
    %1250 = vmatpush1.msra.mxu0 %v1068
    %1251 = vmatprep.subr.mxu0 %v1072
    %1252 = vmatpush1.msra.mxu0 %v1071
    %1253 = vmatprep.subr.mxu0 %v1075
    %1254 = vmatpush1.msra.mxu0 %v1074
    %1255 = vmatprep.subr.mxu0 %v1078
    %1256 = vmatpush1.msra.mxu0 %v1077
    %1257 = vmatprep.mubr.f32.mxu0 %v921
    %1258 = vmatmul.mubr.f32.gmra.mrb[0].mxu0 %v920
    %v1259 = vpop.f32.mrb[0].mxu0
    %v1260 = vadd.f32 %v1181, %v1259
    %v1261 = vpop.f32.mrb[0].mxu0
    %v1262 = vadd.f32 %v1185, %v1261
    %1263 = vmatprep.mubr.f32.mxu0 %v925
    %1264 = vmatmul.mubr.f32.gmra.mrb[0].mxu0 %v924
    %v1265 = vpop.f32.mrb[0].mxu0
    %v1266 = vadd.f32 %v1181, %v1265
    %v1267 = vpop.f32.mrb[0].mxu0
    %v1268 = vadd.f32 %v1185, %v1267
    %1269 = vmatprep.mubr.f32.mxu0 %v929
    %1270 = vmatmul.mubr.f32.gmra.mrb[0].mxu0 %v928
    %v1271 = vpop.f32.mrb[0].mxu0
    %v1272 = vadd.f32 %v1181, %v1271
    %v1273 = vpop.f32.mrb[0].mxu0
    %v1274 = vadd.f32 %v1185, %v1273
    %1275 = vmatprep.mubr.f32.mxu0 %v933
    %1276 = vmatmul.mubr.f32.gmra.mrb[0].mxu0 %v932
    %v1277 = vpop.f32.mrb[0].mxu0
    %v1278 = vadd.f32 %v1181, %v1277
    %v1279 = vpop.f32.mrb[0].mxu0
    %v1280 = vadd.f32 %v1185, %v1279
    %1281 = vmatprep.mubr.f32.mxu0 %v937
    %1282 = vmatmul.mubr.f32.gmra.mrb[0].mxu0 %v936
    %v1283 = vpop.f32.mrb[0].mxu0
    %v1284 = vadd.f32 %v1181, %v1283
    %v1285 = vpop.f32.mrb[0].mxu0
    %v1286 = vadd.f32 %v1185, %v1285
    %1287 = vmatprep.mubr.f32.mxu0 %v941
    %1288 = vmatmul.mubr.f32.gmra.mrb[0].mxu0 %v940
    %v1289 = vpop.f32.mrb[0].mxu0
    %v1290 = vadd.f32 %v1181, %v1289
    %v1291 = vpop.f32.mrb[0].mxu0
    %v1292 = vadd.f32 %v1185, %v1291
    %1293 = vmatprep.mubr.f32.mxu0 %v945
    %1294 = vmatmul.mubr.f32.gmra.mrb[0].mxu0 %v944
    %v1295 = vpop.f32.mrb[0].mxu0
    %v1296 = vadd.f32 %v1181, %v1295
    %v1297 = vpop.f32.mrb[0].mxu0
    %v1298 = vadd.f32 %v1185, %v1297
    %1299 = vmatprep.mubr.f32.mxu0 %v949
    %1300 = vmatmul.mubr.f32.gmra.mrb[0].mxu0 %v948
    %v1301 = vpop.f32.mrb[0].mxu0
    %v1302 = vadd.f32 %v1181, %v1301
    %v1303 = vpop.f32.mrb[0].mxu0
    %v1304 = vadd.f32 %v1185, %v1303
    %1305 = vmatprep.mubr.f32.mxu0 %v953
    %1306 = vmatmul.mubr.f32.gmra.mrb[0].mxu0 %v952
    %v1307 = vpop.f32.mrb[0].mxu0
    %v1308 = vadd.f32 %v1181, %v1307
    %v1309 = vpop.f32.mrb[0].mxu0
    %v1310 = vadd.f32 %v1185, %v1309
    %1311 = vmatprep.mubr.f32.mxu0 %v957
    %1312 = vmatmul.mubr.f32.gmra.mrb[0].mxu0 %v956
    %v1313 = vpop.f32.mrb[0].mxu0
    %v1314 = vadd.f32 %v1181, %v1313
    %v1315 = vpop.f32.mrb[0].mxu0
    %v1316 = vadd.f32 %v1185, %v1315
    %1317 = vmatprep.mubr.f32.mxu0 %v961
    %1318 = vmatmul.mubr.f32.gmra.mrb[0].mxu0 %v960
    %v1319 = vpop.f32.mrb[0].mxu0
    %v1320 = vadd.f32 %v1181, %v1319
    %v1321 = vpop.f32.mrb[0].mxu0
    %v1322 = vadd.f32 %v1185, %v1321
    %1323 = vmatprep.mubr.f32.mxu0 %v965
    %1324 = vmatmul.mubr.f32.gmra.mrb[0].mxu0 %v964
    %v1325 = vpop.f32.mrb[0].mxu0
    %v1326 = vadd.f32 %v1181, %v1325
    %v1327 = vpop.f32.mrb[0].mxu0
    %v1328 = vadd.f32 %v1185, %v1327
    %1329 = vmatprep.mubr.f32.mxu0 %v969
    %1330 = vmatmul.mubr.f32.gmra.mrb[0].mxu0 %v968
    %v1331 = vpop.f32.mrb[0].mxu0
    %v1332 = vadd.f32 %v1181, %v1331
    %v1333 = vpop.f32.mrb[0].mxu0
    %v1334 = vadd.f32 %v1185, %v1333
    %1335 = vmatprep.mubr.f32.mxu0 %v973
    %1336 = vmatmul.mubr.f32.gmra.mrb[0].mxu0 %v972
    %v1337 = vpop.f32.mrb[0].mxu0
    %v1338 = vadd.f32 %v1181, %v1337
    %v1339 = vpop.f32.mrb[0].mxu0
    %v1340 = vadd.f32 %v1185, %v1339
    %1341 = vmatprep.mubr.f32.mxu0 %v977
    %1342 = vmatmul.mubr.f32.gmra.mrb[0].mxu0 %v976
    %v1343 = vpop.f32.mrb[0].mxu0
    %v1344 = vadd.f32 %v1181, %v1343
    %v1345 = vpop.f32.mrb[0].mxu0
    %v1346 = vadd.f32 %v1185, %v1345
    %1347 = vmatprep.mubr.f32.mxu0 %v981
    %1348 = vmatmul.mubr.f32.gmra.mrb[0].mxu0 %v980
    %v1349 = vpop.f32.mrb[0].mxu0
    %v1350 = vadd.f32 %v1181, %v1349
    %v1351 = vpop.f32.mrb[0].mxu0
    %v1352 = vadd.f32 %v1185, %v1351
    %1353 = vdwg.mxu0
    %1354 = vmatprep.subr.mxu0 %v1081
    %1355 = vmatpush1.msra.mxu0 %v1080
    %1356 = vmatprep.subr.mxu0 %v1084
    %1357 = vmatpush1.msra.mxu0 %v1083
    %1358 = vmatprep.subr.mxu0 %v1087
    %1359 = vmatpush1.msra.mxu0 %v1086
    %1360 = vmatprep.subr.mxu0 %v1090
    %1361 = vmatpush1.msra.mxu0 %v1089
    %1362 = vmatprep.subr.mxu0 %v1093
    %1363 = vmatpush1.msra.mxu0 %v1092
    %1364 = vmatprep.subr.mxu0 %v1096
    %1365 = vmatpush1.msra.mxu0 %v1095
    %1366 = vmatprep.subr.mxu0 %v1099
    %1367 = vmatpush1.msra.mxu0 %v1098
    %1368 = vmatprep.subr.mxu0 %v1102
    %1369 = vmatpush1.msra.mxu0 %v1101
    %1370 = vmatprep.subr.mxu0 %v1105
    %1371 = vmatpush1.msra.mxu0 %v1104
    %1372 = vmatprep.subr.mxu0 %v1108
    %1373 = vmatpush1.msra.mxu0 %v1107
    %1374 = vmatprep.subr.mxu0 %v1111
    %1375 = vmatpush1.msra.mxu0 %v1110
    %1376 = vmatprep.subr.mxu0 %v1114
    %1377 = vmatpush1.msra.mxu0 %v1113
    %1378 = vmatprep.subr.mxu0 %v1117
    %1379 = vmatpush1.msra.mxu0 %v1116
    %1380 = vmatprep.subr.mxu0 %v1120
    %1381 = vmatpush1.msra.mxu0 %v1119
    %1382 = vmatprep.subr.mxu0 %v1123
    %1383 = vmatpush1.msra.mxu0 %v1122
    %1384 = vmatprep.subr.mxu0 %v1126
    %1385 = vmatpush1.msra.mxu0 %v1125
    %1386 = vmatprep.subr.mxu0 %v1129
    %1387 = vmatpush1.msra.mxu0 %v1128
    %1388 = vmatprep.subr.mxu0 %v1132
    %1389 = vmatpush1.msra.mxu0 %v1131
    %1390 = vmatprep.subr.mxu0 %v1135
    %1391 = vmatpush1.msra.mxu0 %v1134
    %1392 = vmatprep.subr.mxu0 %v1138
    %1393 = vmatpush1.msra.mxu0 %v1137
    %1394 = vmatprep.subr.mxu0 %v1141
    %1395 = vmatpush1.msra.mxu0 %v1140
    %1396 = vmatprep.subr.mxu0 %v1144
    %1397 = vmatpush1.msra.mxu0 %v1143
    %1398 = vmatprep.subr.mxu0 %v1147
    %1399 = vmatpush1.msra.mxu0 %v1146
    %1400 = vmatprep.subr.mxu0 %v1150
    %1401 = vmatpush1.msra.mxu0 %v1149
    %1402 = vmatprep.subr.mxu0 %v1153
    %1403 = vmatpush1.msra.mxu0 %v1152
    %1404 = vmatprep.subr.mxu0 %v1156
    %1405 = vmatpush1.msra.mxu0 %v1155
    %1406 = vmatprep.subr.mxu0 %v1159
    %1407 = vmatpush1.msra.mxu0 %v1158
    %1408 = vmatprep.subr.mxu0 %v1162
    %1409 = vmatpush1.msra.mxu0 %v1161
    %1410 = vmatprep.subr.mxu0 %v1165
    %1411 = vmatpush1.msra.mxu0 %v1164
    %1412 = vmatprep.subr.mxu0 %v1168
    %1413 = vmatpush1.msra.mxu0 %v1167
    %1414 = vmatprep.subr.mxu0 %v1171
    %1415 = vmatpush1.msra.mxu0 %v1170
    %1416 = vmatprep.subr.mxu0 %v1174
    %1417 = vmatpush1.msra.mxu0 %v1173
    %1418 = vmatprep.mubr.f32.mxu0 %v923
    %1419 = vmatmul.mubr.f32.gmra.mrb[0].mxu0 %v922
    %v1420 = vpop.f32.mrb[0].mxu0
    %v1421 = vadd.f32 %v1260, %v1420
    %v1422 = vpop.f32.mrb[0].mxu0
    %v1423 = vadd.f32 %v1262, %v1422
    %1424 = vmatprep.mubr.f32.mxu0 %v927
    %1425 = vmatmul.mubr.f32.gmra.mrb[0].mxu0 %v926
    %v1426 = vpop.f32.mrb[0].mxu0
    %v1427 = vadd.f32 %v1266, %v1426
    %v1428 = vpop.f32.mrb[0].mxu0
    %v1429 = vadd.f32 %v1268, %v1428
    %1430 = vmatprep.mubr.f32.mxu0 %v931
    %1431 = vmatmul.mubr.f32.gmra.mrb[0].mxu0 %v930
    %v1432 = vpop.f32.mrb[0].mxu0
    %v1433 = vadd.f32 %v1272, %v1432
    %v1434 = vpop.f32.mrb[0].mxu0
    %v1435 = vadd.f32 %v1274, %v1434
    %1436 = vmatprep.mubr.f32.mxu0 %v935
    %1437 = vmatmul.mubr.f32.gmra.mrb[0].mxu0 %v934
    %v1438 = vpop.f32.mrb[0].mxu0
    %v1439 = vadd.f32 %v1278, %v1438
    %v1440 = vpop.f32.mrb[0].mxu0
    %v1441 = vadd.f32 %v1280, %v1440
    %1442 = vmatprep.mubr.f32.mxu0 %v939
    %1443 = vmatmul.mubr.f32.gmra.mrb[0].mxu0 %v938
    %v1444 = vpop.f32.mrb[0].mxu0
    %v1445 = vadd.f32 %v1284, %v1444
    %v1446 = vpop.f32.mrb[0].mxu0
    %v1447 = vadd.f32 %v1286, %v1446
    %1448 = vmatprep.mubr.f32.mxu0 %v943
    %1449 = vmatmul.mubr.f32.gmra.mrb[0].mxu0 %v942
    %v1450 = vpop.f32.mrb[0].mxu0
    %v1451 = vadd.f32 %v1290, %v1450
    %v1452 = vpop.f32.mrb[0].mxu0
    %v1453 = vadd.f32 %v1292, %v1452
    %1454 = vmatprep.mubr.f32.mxu0 %v947
    %1455 = vmatmul.mubr.f32.gmra.mrb[0].mxu0 %v946
    %v1456 = vpop.f32.mrb[0].mxu0
    %v1457 = vadd.f32 %v1296, %v1456
    %v1458 = vpop.f32.mrb[0].mxu0
    %v1459 = vadd.f32 %v1298, %v1458
    %1460 = vmatprep.mubr.f32.mxu0 %v951
    %1461 = vmatmul.mubr.f32.gmra.mrb[0].mxu0 %v950
    %v1462 = vpop.f32.mrb[0].mxu0
    %v1463 = vadd.f32 %v1302, %v1462
    %v1464 = vpop.f32.mrb[0].mxu0
    %v1465 = vadd.f32 %v1304, %v1464
    %1466 = vmatprep.mubr.f32.mxu0 %v955
    %1467 = vmatmul.mubr.f32.gmra.mrb[0].mxu0 %v954
    %v1468 = vpop.f32.mrb[0].mxu0
    %v1469 = vadd.f32 %v1308, %v1468
    %v1470 = vpop.f32.mrb[0].mxu0
    %v1471 = vadd.f32 %v1310, %v1470
    %1472 = vmatprep.mubr.f32.mxu0 %v959
    %1473 = vmatmul.mubr.f32.gmra.mrb[0].mxu0 %v958
    %v1474 = vpop.f32.mrb[0].mxu0
    %v1475 = vadd.f32 %v1314, %v1474
    %v1476 = vpop.f32.mrb[0].mxu0
    %v1477 = vadd.f32 %v1316, %v1476
    %1478 = vmatprep.mubr.f32.mxu0 %v963
    %1479 = vmatmul.mubr.f32.gmra.mrb[0].mxu0 %v962
    %v1480 = vpop.f32.mrb[0].mxu0
    %v1481 = vadd.f32 %v1320, %v1480
    %v1482 = vpop.f32.mrb[0].mxu0
    %v1483 = vadd.f32 %v1322, %v1482
    %1484 = vmatprep.mubr.f32.mxu0 %v967
    %1485 = vmatmul.mubr.f32.gmra.mrb[0].mxu0 %v966
    %v1486 = vpop.f32.mrb[0].mxu0
    %v1487 = vadd.f32 %v1326, %v1486
    %v1488 = vpop.f32.mrb[0].mxu0
    %v1489 = vadd.f32 %v1328, %v1488
    %1490 = vmatprep.mubr.f32.mxu0 %v971
    %1491 = vmatmul.mubr.f32.gmra.mrb[0].mxu0 %v970
    %v1492 = vpop.f32.mrb[0].mxu0
    %v1493 = vadd.f32 %v1332, %v1492
    %v1494 = vpop.f32.mrb[0].mxu0
    %v1495 = vadd.f32 %v1334, %v1494
    %1496 = vmatprep.mubr.f32.mxu0 %v975
    %1497 = vmatmul.mubr.f32.gmra.mrb[0].mxu0 %v974
    %v1498 = vpop.f32.mrb[0].mxu0
    %v1499 = vadd.f32 %v1338, %v1498
    %v1500 = vpop.f32.mrb[0].mxu0
    %v1501 = vadd.f32 %v1340, %v1500
    %1502 = vmatprep.mubr.f32.mxu0 %v979
    %1503 = vmatmul.mubr.f32.gmra.mrb[0].mxu0 %v978
    %v1504 = vpop.f32.mrb[0].mxu0
    %v1505 = vadd.f32 %v1344, %v1504
    %v1506 = vpop.f32.mrb[0].mxu0
    %v1507 = vadd.f32 %v1346, %v1506
    %1508 = vmatprep.mubr.f32.mxu0 %v983
    %1509 = vmatmul.mubr.f32.gmra.mrb[0].mxu0 %v982
    %v1510 = vpop.f32.mrb[0].mxu0
    %v1511 = vadd.f32 %v1350, %v1510
    %v1512 = vpop.f32.mrb[0].mxu0
    %v1513 = vadd.f32 %v1352, %v1512
    %1514 = vdwg.mxu0
    %1515 = vmatprep.subr.mxu0 0.0
    %1516 = vmatpush1.msra.mxu0 %v986
    %1517 = vmatprep.subr.mxu0 0.0
    %1518 = vmatpush1.msra.mxu0 %v989
    %1519 = vmatprep.subr.mxu0 0.0
    %1520 = vmatpush1.msra.mxu0 %v992
    %1521 = vmatprep.subr.mxu0 0.0
    %1522 = vmatpush1.msra.mxu0 %v995
    %1523 = vmatprep.subr.mxu0 0.0
    %1524 = vmatpush1.msra.mxu0 %v998
    %1525 = vmatprep.subr.mxu0 0.0
    %1526 = vmatpush1.msra.mxu0 %v1001
    %1527 = vmatprep.subr.mxu0 0.0
    %1528 = vmatpush1.msra.mxu0 %v1004
    %1529 = vmatprep.subr.mxu0 0.0
    %1530 = vmatpush1.msra.mxu0 %v1007
    %1531 = vmatprep.subr.mxu0 0.0
    %1532 = vmatpush1.msra.mxu0 %v1010
    %1533 = vmatprep.subr.mxu0 0.0
    %1534 = vmatpush1.msra.mxu0 %v1013
    %1535 = vmatprep.subr.mxu0 0.0
    %1536 = vmatpush1.msra.mxu0 %v1016
    %1537 = vmatprep.subr.mxu0 0.0
    %1538 = vmatpush1.msra.mxu0 %v1019
    %1539 = vmatprep.subr.mxu0 0.0
    %1540 = vmatpush1.msra.mxu0 %v1022
    %1541 = vmatprep.subr.mxu0 0.0
    %1542 = vmatpush1.msra.mxu0 %v1025
    %1543 = vmatprep.subr.mxu0 0.0
    %1544 = vmatpush1.msra.mxu0 %v1028
    %1545 = vmatprep.subr.mxu0 0.0
    %1546 = vmatpush1.msra.mxu0 %v1031
    %1547 = vmatprep.subr.mxu0 0.0
    %1548 = vmatpush1.msra.mxu0 %v1034
    %1549 = vmatprep.subr.mxu0 0.0
    %1550 = vmatpush1.msra.mxu0 %v1037
    %1551 = vmatprep.subr.mxu0 0.0
    %1552 = vmatpush1.msra.mxu0 %v1040
    %1553 = vmatprep.subr.mxu0 0.0
    %1554 = vmatpush1.msra.mxu0 %v1043
    %1555 = vmatprep.subr.mxu0 0.0
    %1556 = vmatpush1.msra.mxu0 %v1046
    %1557 = vmatprep.subr.mxu0 0.0
    %1558 = vmatpush1.msra.mxu0 %v1049
    %1559 = vmatprep.subr.mxu0 0.0
    %1560 = vmatpush1.msra.mxu0 %v1052
    %1561 = vmatprep.subr.mxu0 0.0
    %1562 = vmatpush1.msra.mxu0 %v1055
    %1563 = vmatprep.subr.mxu0 0.0
    %1564 = vmatpush1.msra.mxu0 %v1058
    %1565 = vmatprep.subr.mxu0 0.0
    %1566 = vmatpush1.msra.mxu0 %v1061
    %1567 = vmatprep.subr.mxu0 0.0
    %1568 = vmatpush1.msra.mxu0 %v1064
    %1569 = vmatprep.subr.mxu0 0.0
    %1570 = vmatpush1.msra.mxu0 %v1067
    %1571 = vmatprep.subr.mxu0 0.0
    %1572 = vmatpush1.msra.mxu0 %v1070
    %1573 = vmatprep.subr.mxu0 0.0
    %1574 = vmatpush1.msra.mxu0 %v1073
    %1575 = vmatprep.subr.mxu0 0.0
    %1576 = vmatpush1.msra.mxu0 %v1076
    %1577 = vmatprep.subr.mxu0 0.0
    %1578 = vmatpush1.msra.mxu0 %v1079
    %1579 = vmatprep.mubr.f32.mxu0 %v921
    %1580 = vmatmul.mubr.f32.gmra.mrb[0].mxu0 %v920
    %v1581 = vpop.f32.mrb[0].mxu0
    %v1582 = vadd.f32 %v1189, %v1581
    %v1583 = vpop.f32.mrb[0].mxu0
    %1584 = vmatprep.mubr.f32.mxu0 %v925
    %1585 = vmatmul.mubr.f32.gmra.mrb[0].mxu0 %v924
    %v1586 = vpop.f32.mrb[0].mxu0
    %v1587 = vadd.f32 %v1189, %v1586
    %v1588 = vpop.f32.mrb[0].mxu0
    %1589 = vmatprep.mubr.f32.mxu0 %v929
    %1590 = vmatmul.mubr.f32.gmra.mrb[0].mxu0 %v928
    %v1591 = vpop.f32.mrb[0].mxu0
    %v1592 = vadd.f32 %v1189, %v1591
    %v1593 = vpop.f32.mrb[0].mxu0
    %1594 = vmatprep.mubr.f32.mxu0 %v933
    %1595 = vmatmul.mubr.f32.gmra.mrb[0].mxu0 %v932
    %v1596 = vpop.f32.mrb[0].mxu0
    %v1597 = vadd.f32 %v1189, %v1596
    %v1598 = vpop.f32.mrb[0].mxu0
    %1599 = vmatprep.mubr.f32.mxu0 %v937
    %1600 = vmatmul.mubr.f32.gmra.mrb[0].mxu0 %v936
    %v1601 = vpop.f32.mrb[0].mxu0
    %v1602 = vadd.f32 %v1189, %v1601
    %v1603 = vpop.f32.mrb[0].mxu0
    %1604 = vmatprep.mubr.f32.mxu0 %v941
    %1605 = vmatmul.mubr.f32.gmra.mrb[0].mxu0 %v940
    %v1606 = vpop.f32.mrb[0].mxu0
    %v1607 = vadd.f32 %v1189, %v1606
    %v1608 = vpop.f32.mrb[0].mxu0
    %1609 = vmatprep.mubr.f32.mxu0 %v945
    %1610 = vmatmul.mubr.f32.gmra.mrb[0].mxu0 %v944
    %v1611 = vpop.f32.mrb[0].mxu0
    %v1612 = vadd.f32 %v1189, %v1611
    %v1613 = vpop.f32.mrb[0].mxu0
    %1614 = vmatprep.mubr.f32.mxu0 %v949
    %1615 = vmatmul.mubr.f32.gmra.mrb[0].mxu0 %v948
    %v1616 = vpop.f32.mrb[0].mxu0
    %v1617 = vadd.f32 %v1189, %v1616
    %v1618 = vpop.f32.mrb[0].mxu0
    %1619 = vmatprep.mubr.f32.mxu0 %v953
    %1620 = vmatmul.mubr.f32.gmra.mrb[0].mxu0 %v952
    %v1621 = vpop.f32.mrb[0].mxu0
    %v1622 = vadd.f32 %v1189, %v1621
    %v1623 = vpop.f32.mrb[0].mxu0
    %1624 = vmatprep.mubr.f32.mxu0 %v957
    %1625 = vmatmul.mubr.f32.gmra.mrb[0].mxu0 %v956
    %v1626 = vpop.f32.mrb[0].mxu0
    %v1627 = vadd.f32 %v1189, %v1626
    %v1628 = vpop.f32.mrb[0].mxu0
    %1629 = vmatprep.mubr.f32.mxu0 %v961
    %1630 = vmatmul.mubr.f32.gmra.mrb[0].mxu0 %v960
    %v1631 = vpop.f32.mrb[0].mxu0
    %v1632 = vadd.f32 %v1189, %v1631
    %v1633 = vpop.f32.mrb[0].mxu0
    %1634 = vmatprep.mubr.f32.mxu0 %v965
    %1635 = vmatmul.mubr.f32.gmra.mrb[0].mxu0 %v964
    %v1636 = vpop.f32.mrb[0].mxu0
    %v1637 = vadd.f32 %v1189, %v1636
    %v1638 = vpop.f32.mrb[0].mxu0
    %1639 = vmatprep.mubr.f32.mxu0 %v969
    %1640 = vmatmul.mubr.f32.gmra.mrb[0].mxu0 %v968
    %v1641 = vpop.f32.mrb[0].mxu0
    %v1642 = vadd.f32 %v1189, %v1641
    %v1643 = vpop.f32.mrb[0].mxu0
    %1644 = vmatprep.mubr.f32.mxu0 %v973
    %1645 = vmatmul.mubr.f32.gmra.mrb[0].mxu0 %v972
    %v1646 = vpop.f32.mrb[0].mxu0
    %v1647 = vadd.f32 %v1189, %v1646
    %v1648 = vpop.f32.mrb[0].mxu0
    %1649 = vmatprep.mubr.f32.mxu0 %v977
    %1650 = vmatmul.mubr.f32.gmra.mrb[0].mxu0 %v976
    %v1651 = vpop.f32.mrb[0].mxu0
    %v1652 = vadd.f32 %v1189, %v1651
    %v1653 = vpop.f32.mrb[0].mxu0
    %1654 = vmatprep.mubr.f32.mxu0 %v981
    %1655 = vmatmul.mubr.f32.gmra.mrb[0].mxu0 %v980
    %v1656 = vpop.f32.mrb[0].mxu0
    %v1657 = vadd.f32 %v1189, %v1656
    %v1658 = vpop.f32.mrb[0].mxu0
    %1659 = vdwg.mxu0
    %1660 = vmatprep.subr.mxu0 0.0
    %1661 = vmatpush1.msra.mxu0 %v1082
    %1662 = vmatprep.subr.mxu0 0.0
    %1663 = vmatpush1.msra.mxu0 %v1085
    %1664 = vmatprep.subr.mxu0 0.0
    %1665 = vmatpush1.msra.mxu0 %v1088
    %1666 = vmatprep.subr.mxu0 0.0
    %1667 = vmatpush1.msra.mxu0 %v1091
    %1668 = vmatprep.subr.mxu0 0.0
    %1669 = vmatpush1.msra.mxu0 %v1094
    %1670 = vmatprep.subr.mxu0 0.0
    %1671 = vmatpush1.msra.mxu0 %v1097
    %1672 = vmatprep.subr.mxu0 0.0
    %1673 = vmatpush1.msra.mxu0 %v1100
    %1674 = vmatprep.subr.mxu0 0.0
    %1675 = vmatpush1.msra.mxu0 %v1103
    %1676 = vmatprep.subr.mxu0 0.0
    %1677 = vmatpush1.msra.mxu0 %v1106
    %1678 = vmatprep.subr.mxu0 0.0
    %1679 = vmatpush1.msra.mxu0 %v1109
    %1680 = vmatprep.subr.mxu0 0.0
    %1681 = vmatpush1.msra.mxu0 %v1112
    %1682 = vmatprep.subr.mxu0 0.0
    %1683 = vmatpush1.msra.mxu0 %v1115
    %1684 = vmatprep.subr.mxu0 0.0
    %1685 = vmatpush1.msra.mxu0 %v1118
    %1686 = vmatprep.subr.mxu0 0.0
    %1687 = vmatpush1.msra.mxu0 %v1121
    %1688 = vmatprep.subr.mxu0 0.0
    %1689 = vmatpush1.msra.mxu0 %v1124
    %1690 = vmatprep.subr.mxu0 0.0
    %1691 = vmatpush1.msra.mxu0 %v1127
    %1692 = vmatprep.subr.mxu0 0.0
    %1693 = vmatpush1.msra.mxu0 %v1130
    %1694 = vmatprep.subr.mxu0 0.0
    %1695 = vmatpush1.msra.mxu0 %v1133
    %1696 = vmatprep.subr.mxu0 0.0
    %1697 = vmatpush1.msra.mxu0 %v1136
    %1698 = vmatprep.subr.mxu0 0.0
    %1699 = vmatpush1.msra.mxu0 %v1139
    %1700 = vmatprep.subr.mxu0 0.0
    %1701 = vmatpush1.msra.mxu0 %v1142
    %1702 = vmatprep.subr.mxu0 0.0
    %1703 = vmatpush1.msra.mxu0 %v1145
    %1704 = vmatprep.subr.mxu0 0.0
    %1705 = vmatpush1.msra.mxu0 %v1148
    %1706 = vmatprep.subr.mxu0 0.0
    %1707 = vmatpush1.msra.mxu0 %v1151
    %1708 = vmatprep.subr.mxu0 0.0
    %1709 = vmatpush1.msra.mxu0 %v1154
    %1710 = vmatprep.subr.mxu0 0.0
    %1711 = vmatpush1.msra.mxu0 %v1157
    %1712 = vmatprep.subr.mxu0 0.0
    %1713 = vmatpush1.msra.mxu0 %v1160
    %1714 = vmatprep.subr.mxu0 0.0
    %1715 = vmatpush1.msra.mxu0 %v1163
    %1716 = vmatprep.subr.mxu0 0.0
    %1717 = vmatpush1.msra.mxu0 %v1166
    %1718 = vmatprep.subr.mxu0 0.0
    %1719 = vmatpush1.msra.mxu0 %v1169
    %1720 = vmatprep.subr.mxu0 0.0
    %1721 = vmatpush1.msra.mxu0 %v1172
    %1722 = vmatprep.subr.mxu0 0.0
    %1723 = vmatpush1.msra.mxu0 %v1175
    %1724 = vmatprep.mubr.f32.mxu0 %v923
    %1725 = vmatmul.mubr.f32.gmra.mrb[0].mxu0 %v922
    %v1726 = vpop.f32.mrb[0].mxu0
    %v1727 = vadd.f32 %v1582, %v1726
    %v1728 = vpop.f32.mrb[0].mxu0
    %1729 = vmatprep.mubr.f32.mxu0 %v927
    %1730 = vmatmul.mubr.f32.gmra.mrb[0].mxu0 %v926
    %v1731 = vpop.f32.mrb[0].mxu0
    %v1732 = vadd.f32 %v1587, %v1731
    %v1733 = vpop.f32.mrb[0].mxu0
    %1734 = vmatprep.mubr.f32.mxu0 %v931
    %1735 = vmatmul.mubr.f32.gmra.mrb[0].mxu0 %v930
    %v1736 = vpop.f32.mrb[0].mxu0
    %v1737 = vadd.f32 %v1592, %v1736
    %v1738 = vpop.f32.mrb[0].mxu0
    %1739 = vmatprep.mubr.f32.mxu0 %v935
    %1740 = vmatmul.mubr.f32.gmra.mrb[0].mxu0 %v934
    %v1741 = vpop.f32.mrb[0].mxu0
    %v1742 = vadd.f32 %v1597, %v1741
    %v1743 = vpop.f32.mrb[0].mxu0
    %1744 = vmatprep.mubr.f32.mxu0 %v939
    %1745 = vmatmul.mubr.f32.gmra.mrb[0].mxu0 %v938
    %v1746 = vpop.f32.mrb[0].mxu0
    %v1747 = vadd.f32 %v1602, %v1746
    %v1748 = vpop.f32.mrb[0].mxu0
    %1749 = vmatprep.mubr.f32.mxu0 %v943
    %1750 = vmatmul.mubr.f32.gmra.mrb[0].mxu0 %v942
    %v1751 = vpop.f32.mrb[0].mxu0
    %v1752 = vadd.f32 %v1607, %v1751
    %v1753 = vpop.f32.mrb[0].mxu0
    %1754 = vmatprep.mubr.f32.mxu0 %v947
    %1755 = vmatmul.mubr.f32.gmra.mrb[0].mxu0 %v946
    %v1756 = vpop.f32.mrb[0].mxu0
    %v1757 = vadd.f32 %v1612, %v1756
    %v1758 = vpop.f32.mrb[0].mxu0
    %1759 = vmatprep.mubr.f32.mxu0 %v951
    %1760 = vmatmul.mubr.f32.gmra.mrb[0].mxu0 %v950
    %v1761 = vpop.f32.mrb[0].mxu0
    %v1762 = vadd.f32 %v1617, %v1761
    %v1763 = vpop.f32.mrb[0].mxu0
    %1764 = vmatprep.mubr.f32.mxu0 %v955
    %1765 = vmatmul.mubr.f32.gmra.mrb[0].mxu0 %v954
    %v1766 = vpop.f32.mrb[0].mxu0
    %v1767 = vadd.f32 %v1622, %v1766
    %v1768 = vpop.f32.mrb[0].mxu0
    %1769 = vmatprep.mubr.f32.mxu0 %v959
    %1770 = vmatmul.mubr.f32.gmra.mrb[0].mxu0 %v958
    %v1771 = vpop.f32.mrb[0].mxu0
    %v1772 = vadd.f32 %v1627, %v1771
    %v1773 = vpop.f32.mrb[0].mxu0
    %1774 = vmatprep.mubr.f32.mxu0 %v963
    %1775 = vmatmul.mubr.f32.gmra.mrb[0].mxu0 %v962
    %v1776 = vpop.f32.mrb[0].mxu0
    %v1777 = vadd.f32 %v1632, %v1776
    %v1778 = vpop.f32.mrb[0].mxu0
    %1779 = vmatprep.mubr.f32.mxu0 %v967
    %1780 = vmatmul.mubr.f32.gmra.mrb[0].mxu0 %v966
    %v1781 = vpop.f32.mrb[0].mxu0
    %v1782 = vadd.f32 %v1637, %v1781
    %v1783 = vpop.f32.mrb[0].mxu0
    %1784 = vmatprep.mubr.f32.mxu0 %v971
    %1785 = vmatmul.mubr.f32.gmra.mrb[0].mxu0 %v970
    %v1786 = vpop.f32.mrb[0].mxu0
    %v1787 = vadd.f32 %v1642, %v1786
    %v1788 = vpop.f32.mrb[0].mxu0
    %1789 = vmatprep.mubr.f32.mxu0 %v975
    %1790 = vmatmul.mubr.f32.gmra.mrb[0].mxu0 %v974
    %v1791 = vpop.f32.mrb[0].mxu0
    %v1792 = vadd.f32 %v1647, %v1791
    %v1793 = vpop.f32.mrb[0].mxu0
    %1794 = vmatprep.mubr.f32.mxu0 %v979
    %1795 = vmatmul.mubr.f32.gmra.mrb[0].mxu0 %v978
    %v1796 = vpop.f32.mrb[0].mxu0
    %v1797 = vadd.f32 %v1652, %v1796
    %v1798 = vpop.f32.mrb[0].mxu0
    %1799 = vmatprep.mubr.f32.mxu0 %v983
    %1800 = vmatmul.mubr.f32.gmra.mrb[0].mxu0 %v982
    %v1801 = vpop.f32.mrb[0].mxu0
    %v1802 = vadd.f32 %v1657, %v1801
    %v1803 = vpop.f32.mrb[0].mxu0
    %1804 = vdwg.mxu0
    %v1805 = vmax.f32 %v1421, 0.0
    %v1806 = vmax.f32 %v1423, 0.0
    %v1807 = vmax.f32 %v1727, 0.0
    %v1808 = vmax.f32 %v1427, 0.0
    %v1809 = vmax.f32 %v1429, 0.0
    %v1810 = vmax.f32 %v1732, 0.0
    %v1811 = vmax.f32 %v1433, 0.0
    %v1812 = vmax.f32 %v1435, 0.0
    %v1813 = vmax.f32 %v1737, 0.0
    %v1814 = vmax.f32 %v1439, 0.0
    %v1815 = vmax.f32 %v1441, 0.0
    %v1816 = vmax.f32 %v1742, 0.0
    %v1817 = vmax.f32 %v1445, 0.0
    %v1818 = vmax.f32 %v1447, 0.0
    %v1819 = vmax.f32 %v1747, 0.0
    %v1820 = vmax.f32 %v1451, 0.0
    %v1821 = vmax.f32 %v1453, 0.0
    %v1822 = vmax.f32 %v1752, 0.0
    %v1823 = vmax.f32 %v1457, 0.0
    %v1824 = vmax.f32 %v1459, 0.0
    %v1825 = vmax.f32 %v1757, 0.0
    %v1826 = vmax.f32 %v1463, 0.0
    %v1827 = vmax.f32 %v1465, 0.0
    %v1828 = vmax.f32 %v1762, 0.0
    %v1829 = vmax.f32 %v1469, 0.0
    %v1830 = vmax.f32 %v1471, 0.0
    %v1831 = vmax.f32 %v1767, 0.0
    %v1832 = vmax.f32 %v1475, 0.0
    %v1833 = vmax.f32 %v1477, 0.0
    %v1834 = vmax.f32 %v1772, 0.0
    %v1835 = vmax.f32 %v1481, 0.0
    %v1836 = vmax.f32 %v1483, 0.0
    %v1837 = vmax.f32 %v1777, 0.0
    %v1838 = vmax.f32 %v1487, 0.0
    %v1839 = vmax.f32 %v1489, 0.0
    %v1840 = vmax.f32 %v1782, 0.0
    %v1841 = vmax.f32 %v1493, 0.0
    %v1842 = vmax.f32 %v1495, 0.0
    %v1843 = vmax.f32 %v1787, 0.0
    %v1844 = vmax.f32 %v1499, 0.0
    %v1845 = vmax.f32 %v1501, 0.0
    %v1846 = vmax.f32 %v1792, 0.0
    %v1847 = vmax.f32 %v1505, 0.0
    %v1848 = vmax.f32 %v1507, 0.0
    %v1849 = vmax.f32 %v1797, 0.0
    %v1850 = vmax.f32 %v1511, 0.0
    %v1851 = vmax.f32 %v1513, 0.0
    %v1852 = vmax.f32 %v1802, 0.0
    %v1853 = vld [vmem:[%s7] sm:$0x7]
    %s1854 = sld [smem:[#allocation2]]
    %v1855 = vstv %s1854
    %v1857 = vlaneseq
    %v1858 = vshrl.u32 %v1857, 7
    %v1859 = vsub.s32 0, %v1858
    %v1860 = vrot.slane %v1853, %v1859
    %v1861 = vlaneseq
    %v1862 = vshrl.u32 %v1861, 7
    %v1863 = vsub.s32 1, %v1862
    %v1864 = vrot.slane %v1853, %v1863
    %v1865 = vlaneseq
    %v1866 = vshrl.u32 %v1865, 7
    %v1867 = vsub.s32 2, %v1866
    %v1868 = vrot.slane %v1853, %v1867
    %1872 = vmatprep.subr.mxu0 %v1806
    %1873 = vmatpush1.xpose.msra.mxu0 %v1805
    %1874 = vmatprep.subr.mxu0 %v1809
    %1875 = vmatpush1.xpose.msra.mxu0 %v1808
    %1876 = vmatprep.subr.mxu0 %v1812
    %1877 = vmatpush1.xpose.msra.mxu0 %v1811
    %1878 = vmatprep.subr.mxu0 %v1815
    %1879 = vmatpush1.xpose.msra.mxu0 %v1814
    %1880 = vmatprep.subr.mxu0 %v1818
    %1881 = vmatpush1.xpose.msra.mxu0 %v1817
    %1882 = vmatprep.subr.mxu0 %v1821
    %1883 = vmatpush1.xpose.msra.mxu0 %v1820
    %1884 = vmatprep.subr.mxu0 %v1824
    %1885 = vmatpush1.xpose.msra.mxu0 %v1823
    %1886 = vmatprep.subr.mxu0 %v1827
    %1887 = vmatpush1.xpose.msra.mxu0 %v1826
    %1888 = vmatprep.subr.mxu0 %v1830
    %1889 = vmatpush1.xpose.msra.mxu0 %v1829
    %1890 = vmatprep.subr.mxu0 %v1833
    %1891 = vmatpush1.xpose.msra.mxu0 %v1832
    %1892 = vmatprep.subr.mxu0 %v1836
    %1893 = vmatpush1.xpose.msra.mxu0 %v1835
    %1894 = vmatprep.subr.mxu0 %v1839
    %1895 = vmatpush1.xpose.msra.mxu0 %v1838
    %1896 = vmatprep.subr.mxu0 %v1842
    %1897 = vmatpush1.xpose.msra.mxu0 %v1841
    %1898 = vmatprep.subr.mxu0 %v1845
    %1899 = vmatpush1.xpose.msra.mxu0 %v1844
    %1900 = vmatprep.subr.mxu0 %v1848
    %1901 = vmatpush1.xpose.msra.mxu0 %v1847
    %1902 = vmatprep.subr.mxu0 %v1851
    %1903 = vmatpush1.xpose.msra.mxu0 %v1850
    %1904 = vmatprep.subr.mxu0 0.0
    %1905 = vmatpush1.xpose.msra.mxu0 0.0
    %1906 = vmatprep.subr.mxu0 0.0
    %1907 = vmatpush1.xpose.msra.mxu0 0.0
    %1908 = vmatprep.subr.mxu0 0.0
    %1909 = vmatpush1.xpose.msra.mxu0 0.0
    %1910 = vmatprep.subr.mxu0 0.0
    %1911 = vmatpush1.xpose.msra.mxu0 0.0
    %1912 = vmatprep.subr.mxu0 0.0
    %1913 = vmatpush1.xpose.msra.mxu0 0.0
    %1914 = vmatprep.subr.mxu0 0.0
    %1915 = vmatpush1.xpose.msra.mxu0 0.0
    %1916 = vmatprep.subr.mxu0 0.0
    %1917 = vmatpush1.xpose.msra.mxu0 0.0
    %1918 = vmatprep.subr.mxu0 0.0
    %1919 = vmatpush1.xpose.msra.mxu0 0.0
    %1920 = vmatprep.subr.mxu0 0.0
    %1921 = vmatpush1.xpose.msra.mxu0 0.0
    %1922 = vmatprep.subr.mxu0 0.0
    %1923 = vmatpush1.xpose.msra.mxu0 0.0
    %1924 = vmatprep.subr.mxu0 0.0
    %1925 = vmatpush1.xpose.msra.mxu0 0.0
    %1926 = vmatprep.subr.mxu0 0.0
    %1927 = vmatpush1.xpose.msra.mxu0 0.0
    %1928 = vmatprep.subr.mxu0 0.0
    %1929 = vmatpush1.xpose.msra.mxu0 0.0
    %1930 = vmatprep.subr.mxu0 0.0
    %1931 = vmatpush1.xpose.msra.mxu0 0.0
    %1932 = vmatprep.subr.mxu0 0.0
    %1933 = vmatpush1.xpose.msra.mxu0 0.0
    %1934 = vmatprep.subr.mxu0 0.0
    %1935 = vmatpush1.xpose.msra.mxu0 0.0
    %1936 = vmatprep.mubr.f32.mxu0 %v1864
    %1937 = vmatmul.mubr.f32.gmra.mrb[0].mxu0 %v1860
    %v1938 = vpop.f32.mrb[0].mxu0
    %v1939 = vadd.f32 %v1855, %v1938
    %v1940 = vpop.f32.mrb[0].mxu0
    %1941 = vdwg.mxu0
    %1942 = vmatprep.subr.mxu0 0.0
    %1943 = vmatpush1.xpose.msra.mxu0 %v1807
    %1944 = vmatprep.subr.mxu0 0.0
    %1945 = vmatpush1.xpose.msra.mxu0 %v1810
    %1946 = vmatprep.subr.mxu0 0.0
    %1947 = vmatpush1.xpose.msra.mxu0 %v1813
    %1948 = vmatprep.subr.mxu0 0.0
    %1949 = vmatpush1.xpose.msra.mxu0 %v1816
    %1950 = vmatprep.subr.mxu0 0.0
    %1951 = vmatpush1.xpose.msra.mxu0 %v1819
    %1952 = vmatprep.subr.mxu0 0.0
    %1953 = vmatpush1.xpose.msra.mxu0 %v1822
    %1954 = vmatprep.subr.mxu0 0.0
    %1955 = vmatpush1.xpose.msra.mxu0 %v1825
    %1956 = vmatprep.subr.mxu0 0.0
    %1957 = vmatpush1.xpose.msra.mxu0 %v1828
    %1958 = vmatprep.subr.mxu0 0.0
    %1959 = vmatpush1.xpose.msra.mxu0 %v1831
    %1960 = vmatprep.subr.mxu0 0.0
    %1961 = vmatpush1.xpose.msra.mxu0 %v1834
    %1962 = vmatprep.subr.mxu0 0.0
    %1963 = vmatpush1.xpose.msra.mxu0 %v1837
    %1964 = vmatprep.subr.mxu0 0.0
    %1965 = vmatpush1.xpose.msra.mxu0 %v1840
    %1966 = vmatprep.subr.mxu0 0.0
    %1967 = vmatpush1.xpose.msra.mxu0 %v1843
    %1968 = vmatprep.subr.mxu0 0.0
    %1969 = vmatpush1.xpose.msra.mxu0 %v1846
    %1970 = vmatprep.subr.mxu0 0.0
    %1971 = vmatpush1.xpose.msra.mxu0 %v1849
    %1972 = vmatprep.subr.mxu0 0.0
    %1973 = vmatpush1.xpose.msra.mxu0 %v1852
    %1974 = vmatprep.subr.mxu0 0.0
    %1975 = vmatpush1.xpose.msra.mxu0 0.0
    %1976 = vmatprep.subr.mxu0 0.0
    %1977 = vmatpush1.xpose.msra.mxu0 0.0
    %1978 = vmatprep.subr.mxu0 0.0
    %1979 = vmatpush1.xpose.msra.mxu0 0.0
    %1980 = vmatprep.subr.mxu0 0.0
    %1981 = vmatpush1.xpose.msra.mxu0 0.0
    %1982 = vmatprep.subr.mxu0 0.0
    %1983 = vmatpush1.xpose.msra.mxu0 0.0
    %1984 = vmatprep.subr.mxu0 0.0
    %1985 = vmatpush1.xpose.msra.mxu0 0.0
    %1986 = vmatprep.subr.mxu0 0.0
    %1987 = vmatpush1.xpose.msra.mxu0 0.0
    %1988 = vmatprep.subr.mxu0 0.0
    %1989 = vmatpush1.xpose.msra.mxu0 0.0
    %1990 = vmatprep.subr.mxu0 0.0
    %1991 = vmatpush1.xpose.msra.mxu0 0.0
    %1992 = vmatprep.subr.mxu0 0.0
    %1993 = vmatpush1.xpose.msra.mxu0 0.0
    %1994 = vmatprep.subr.mxu0 0.0
    %1995 = vmatpush1.xpose.msra.mxu0 0.0
    %1996 = vmatprep.subr.mxu0 0.0
    %1997 = vmatpush1.xpose.msra.mxu0 0.0
    %1998 = vmatprep.subr.mxu0 0.0
    %1999 = vmatpush1.xpose.msra.mxu0 0.0
    %2000 = vmatprep.subr.mxu0 0.0
    %2001 = vmatpush1.xpose.msra.mxu0 0.0
    %2002 = vmatprep.subr.mxu0 0.0
    %2003 = vmatpush1.xpose.msra.mxu0 0.0
    %2004 = vmatprep.subr.mxu0 0.0
    %2005 = vmatpush1.xpose.msra.mxu0 0.0
    %2006 = vmatprep.mubr.f32.mxu0 0.0
    %2007 = vmatmul.mubr.f32.gmra.mrb[0].mxu0 %v1868
    %v2008 = vpop.f32.mrb[0].mxu0
    %v2009 = vadd.f32 %v1939, %v2008
    %v2010 = vpop.f32.mrb[0].mxu0
    %2011 = vdwg.mxu0
    %2012 = vst [vmem:[#allocation6] sm:$0x1] %v2009
    // Predicated region
    $region42: #{tpu_custom_call.1} parent=1 // pred_check
      _
    $region43: #{tpu_custom_call.1} parent=1 // pred_check_branch
      %2014 = sbr.rel (0) target = $region45
    $region44: #{tpu_custom_call.1} parent=1 // pred_region
      %s2016 = ssub.s32 16, 16
      %2017 = vsyncadd [#allocation5], %s2016
      %s2019 = sshll.u32 [#allocation6], 4
      %s2020 = int_to_ptr.vmem [resolvable:$true] %s2019
      %2022 = dma.vmem_to_hbm [thread:$0]  %s2020, 16, %s9, [#allocation5]
    $region45: #{tpu_custom_call.1} parent=1 // pred_fallthru
      _
    // Predicated region
    $region46: #{tpu_custom_call.1} parent=1 // pred_check
      _
    $region47: #{tpu_custom_call.1} parent=1 // pred_check_branch
      %2024 = sbr.rel (0) target = $region49
    $region48: #{tpu_custom_call.1} parent=1 // pred_region
      %2025 = dma.done [#allocation5], 16
    $region49: #{tpu_custom_call.1} parent=1 // pred_fallthru
      _
    %2026 = vsyncpa [#allocation4], 1
    %2027 = vsyncpa [#allocation5], 1

</llo_original>
